<compile_context>
chip_gen: v7x
topology: tpu7x:2x2x1
jax: 0.10.0
libtpu: 0.0.40
codegen_flags: <defaults>
</compile_context>

<pallas_src>
import jax
import jax.numpy as jnp
from jax.experimental import pallas as pl
from jax.experimental.pallas import tpu as pltpu

OMEGA_0 = 30.0


def _sine_linear_kernel(x_ref, w_ref, b_ref, o_ref, acc_ref):
    # x_ref: (tm, tk)  w_ref: (tk, tn)  b_ref: (1, tn)  o_ref: (tm, tn)
    k = pl.program_id(2)

    @pl.when(k == 0)
    def _():
        acc_ref[...] = jnp.zeros_like(acc_ref)

    acc_ref[...] += jnp.dot(x_ref[...], w_ref[...],
                            preferred_element_type=jnp.float32)

    @pl.when(k == pl.num_programs(2) - 1)
    def _():
        y = jnp.sin(OMEGA_0 * (acc_ref[...] + b_ref[...]))
        o_ref[...] = y.astype(o_ref.dtype)


def _sine_linear_residual_kernel(x_ref, w_ref, b_ref, r_ref, o_ref, acc_ref):
    # Same as above, but fuses the ResBlock tail: 0.5 * (sin(...) + residual).
    k = pl.program_id(2)

    @pl.when(k == 0)
    def _():
        acc_ref[...] = jnp.zeros_like(acc_ref)

    acc_ref[...] += jnp.dot(x_ref[...], w_ref[...],
                            preferred_element_type=jnp.float32)

    @pl.when(k == pl.num_programs(2) - 1)
    def _():
        y = jnp.sin(OMEGA_0 * (acc_ref[...] + b_ref[...]))
        o_ref[...] = (0.5 * (y + r_ref[...].astype(jnp.float32))).astype(o_ref.dtype)


def _pick_tile(dim, pref, align):
    """Largest legal tile <= pref: either the full dim or an align-multiple divisor."""
    if dim <= pref:
        return dim                     # full-extent block: always legal
    t = (pref // align) * align
    while t >= align:
        if dim % t == 0:
            return t
        t -= align
    return dim                         # fall back to full extent


def sine_linear(x, w_kn, b, residual=None, *,
                tm=256, tn=256, tk=512, compute_dtype=None):
    """out = sin(30 * (x @ w_kn + b)); if residual given: 0.5 * (out + residual).

    x: (M, K), w_kn: (K, N) pre-transposed weight, b: (N,), residual: (M, N) or None.
    """
    M, K = x.shape
    K2, N = w_kn.shape
    assert K == K2 and b.shape == (N,)
    out_dtype = x.dtype

    if compute_dtype is not None:      # e.g. jnp.bfloat16 on v6e/v7x; acc stays f32
        x = x.astype(compute_dtype)
        w_kn = w_kn.astype(compute_dtype)

    tm = _pick_tile(M, tm, 8)          # sublane-aligned row tile
    tn = _pick_tile(N, tn, 128)        # lane-dense output stores
    tk = _pick_tile(K, tk, 128)        # reduction tile

    b2 = b.reshape(1, N).astype(jnp.float32)

    grid = (pl.cdiv(M, tm), pl.cdiv(N, tn), pl.cdiv(K, tk))

    in_specs = [
        pl.BlockSpec((tm, tk), lambda i, j, k: (i, k)),   # x tile
        pl.BlockSpec((tk, tn), lambda i, j, k: (k, j)),   # weight tile
        pl.BlockSpec((1, tn), lambda i, j, k: (0, j)),    # bias tile
    ]
    args = [x, w_kn, b2]
    if residual is None:
        kernel = _sine_linear_kernel
    else:
        in_specs.append(pl.BlockSpec((tm, tn), lambda i, j, k: (i, j)))
        args.append(residual)
        kernel = _sine_linear_residual_kernel

    return pl.pallas_call(
        kernel,
        out_shape=jax.ShapeDtypeStruct((M, N), out_dtype),
        grid=grid,
        in_specs=in_specs,
        out_specs=pl.BlockSpec((tm, tn), lambda i, j, k: (i, j)),
        scratch_shapes=[pltpu.VMEM((tm, tn), jnp.float32)],
        compiler_params=pltpu.CompilerParams(
            dimension_semantics=("parallel", "parallel", "arbitrary"),
            vmem_limit_bytes=32 * 1024 * 1024,
        ),
    )(*args)


def resblock_forward(x, params, *, compute_dtype=None):
    """ResBlock: 0.5 * (SineLayer2(SineLayer1(x)) + transform_or_identity(x))."""
    h1 = sine_linear(x, params["w1"], params["b1"], compute_dtype=compute_dtype)
    if "wt" in params:                 # in_features != out_features -> SineLayer shortcut
        res = sine_linear(x, params["wt"], params["bt"], compute_dtype=compute_dtype)
    else:
        res = x
    return sine_linear(h1, params["w2"], params["b2"], residual=res,
                       compute_dtype=compute_dtype)


def _sine_layer_params(key, in_features, out_features, is_first=False):
    """SIREN-style init matching SineLayer.init_weights + nn.Linear default bias."""
    kw, kb = jax.random.split(key)
    if is_first:
        w_bound = 1.0 / in_features
    else:
        w_bound = (6.0 / in_features) ** 0.5 / OMEGA_0
    w = jax.random.uniform(kw, (out_features, in_features), jnp.float32,
                           minval=-w_bound, maxval=w_bound)
    b_bound = 1.0 / (in_features ** 0.5)
    b = jax.random.uniform(kb, (out_features,), jnp.float32,
                           minval=-b_bound, maxval=b_bound)
    # Pre-transpose ONCE at parameter-build time: kernel consumes (K, N).
    return w.T, b


if __name__ == "__main__":
    # Small shapes consistent with a CoordNet ResBlock (in_features != out_features
    # so the SineLayer shortcut path is exercised too).
    batch = 128
    in_features = 32
    out_features = 64

    key = jax.random.PRNGKey(0)
    kx, k1, k2, kt = jax.random.split(key, 4)

    x = jax.random.normal(kx, (batch, in_features), dtype=jnp.float32)

    w1, b1 = _sine_layer_params(k1, in_features, out_features)
    w2, b2 = _sine_layer_params(k2, out_features, out_features)
    params = {"w1": w1, "b1": b1, "w2": w2, "b2": b2}
    if in_features != out_features:
        wt, bt = _sine_layer_params(kt, in_features, out_features)
        params["wt"], params["bt"] = wt, bt

    out = resblock_forward(x, params)
    out = jax.block_until_ready(out)

    # Plain-JAX reference of the same forward pass.
    def ref_sine_linear(xx, w_kn, bb):
        return jnp.sin(OMEGA_0 * (jnp.dot(xx, w_kn,
                                          preferred_element_type=jnp.float32) + bb))

    h1_ref = ref_sine_linear(x, params["w1"], params["b1"])
    res_ref = (ref_sine_linear(x, params["wt"], params["bt"])
               if "wt" in params else x)
    ref = 0.5 * (ref_sine_linear(h1_ref, params["w2"], params["b2"]) + res_ref)

    assert out.shape == (batch, out_features)
    # sin(30*·) amplifies matmul rounding differences ~30x across two layers;
    # tolerance covers MXU-vs-XLA rounding, not a looser model.
    assert jnp.allclose(out, ref, atol=2e-3, rtol=2e-3), \
        float(jnp.max(jnp.abs(out - ref)))

    print("KERNEL_OK")
</pallas_src>

<mosaic_0001>
module attributes {stable_mosaic.version = 11 : i64} {
  func.func @_sine_linear_kernel(%arg0: i32, %arg1: i32, %arg2: i32, %arg3: memref<128x32xf32, #tpu.memory_space<vmem>>, %arg4: memref<32x64xf32, #tpu.memory_space<vmem>>, %arg5: memref<1x64xf32, #tpu.memory_space<vmem>>, %arg6: memref<128x64xf32, #tpu.memory_space<vmem>>, %arg7: memref<128x64xf32, #tpu.memory_space<vmem>>) attributes {dimension_semantics = [#tpu.dimension_semantics<parallel>, #tpu.dimension_semantics<parallel>, #tpu.dimension_semantics<arbitrary>], iteration_bounds = array<i64: 1, 1, 1>, scalar_prefetch = 0 : i64, scratch_operands = 1 : i64, tpu.core_type = #tpu.core_type<tc>, window_params = [{transform_indices = @transform_0, window_bounds = array<i64: 128, 32>}, {transform_indices = @transform_1, window_bounds = array<i64: 32, 64>}, {transform_indices = @transform_2, window_bounds = array<i64: 1, 64>}, {transform_indices = @transform_3, window_bounds = array<i64: 128, 64>}]} {
    %c0_i32 = arith.constant 0 : i32
    %0 = arith.cmpi eq, %arg2, %c0_i32 : i32
    %1 = arith.extui %0 : i1 to i32
    %c0_i32_0 = arith.constant 0 : i32
    %2 = arith.cmpi ne, %1, %c0_i32_0 : i32
    scf.if %2 {
      %cst_10 = arith.constant 0.000000e+00 : f32
      %12 = vector.broadcast %cst_10 : f32 to vector<128x64xf32>
      %c0_11 = arith.constant 0 : index
      %c0_12 = arith.constant 0 : index
      %13 = vector.load %arg7[%c0_11, %c0_12] : memref<128x64xf32, #tpu.memory_space<vmem>>, vector<128x64xf32>
      tpu.vector_store %arg7[%c0_11, %c0_12], %12 {strides = array<i32>} : memref<128x64xf32, #tpu.memory_space<vmem>>, vector<128x64xf32>,
    } else {
    }
    %c0 = arith.constant 0 : index
    %c0_1 = arith.constant 0 : index
    %3 = vector.load %arg7[%c0, %c0_1] : memref<128x64xf32, #tpu.memory_space<vmem>>, vector<128x64xf32>
    %c0_2 = arith.constant 0 : index
    %c0_3 = arith.constant 0 : index
    %4 = vector.load %arg3[%c0_2, %c0_3] : memref<128x32xf32, #tpu.memory_space<vmem>>, vector<128x32xf32>
    %c0_4 = arith.constant 0 : index
    %c0_5 = arith.constant 0 : index
    %5 = vector.load %arg4[%c0_4, %c0_5] : memref<32x64xf32, #tpu.memory_space<vmem>>, vector<32x64xf32>
    %cst = arith.constant dense<0.000000e+00> : vector<128x64xf32>
    %6 = tpu.matmul %4, %5, %cst {dimension_numbers = #tpu.dot_dimension_numbers<[1], [0], [0], [1], [0, 0, 1, 1], [], []>} : vector<128x32xf32>, vector<32x64xf32>, vector<128x64xf32> -> vector<128x64xf32>
    %7 = arith.addf %3, %6 : vector<128x64xf32>
    %c0_6 = arith.constant 0 : index
    %c0_7 = arith.constant 0 : index
    %8 = vector.load %arg7[%c0_6, %c0_7] : memref<128x64xf32, #tpu.memory_space<vmem>>, vector<128x64xf32>
    tpu.vector_store %arg7[%c0_6, %c0_7], %7 {strides = array<i32>} : memref<128x64xf32, #tpu.memory_space<vmem>>, vector<128x64xf32>,
    %c0_i32_8 = arith.constant 0 : i32
    %9 = arith.cmpi eq, %arg2, %c0_i32_8 : i32
    %10 = arith.extui %9 : i1 to i32
    %c0_i32_9 = arith.constant 0 : i32
    %11 = arith.cmpi ne, %10, %c0_i32_9 : i32
    scf.if %11 {
      %c0_10 = arith.constant 0 : index
      %c0_11 = arith.constant 0 : index
      %12 = vector.load %arg7[%c0_10, %c0_11] : memref<128x64xf32, #tpu.memory_space<vmem>>, vector<128x64xf32>
      %c0_12 = arith.constant 0 : index
      %c0_13 = arith.constant 0 : index
      %13 = vector.load %arg5[%c0_12, %c0_13] : memref<1x64xf32, #tpu.memory_space<vmem>>, vector<1x64xf32>
      %14 = vector.broadcast %13 : vector<1x64xf32> to vector<128x64xf32>
      %15 = arith.addf %12, %14 : vector<128x64xf32>
      %cst_14 = arith.constant 3.000000e+01 : f32
      %16 = vector.broadcast %cst_14 : f32 to vector<128x64xf32>
      %17 = arith.mulf %16, %15 : vector<128x64xf32>
      %18 = math.sin %17 : vector<128x64xf32>
      %c0_15 = arith.constant 0 : index
      %c0_16 = arith.constant 0 : index
      %19 = vector.load %arg6[%c0_15, %c0_16] : memref<128x64xf32, #tpu.memory_space<vmem>>, vector<128x64xf32>
      tpu.vector_store %arg6[%c0_15, %c0_16], %18 {strides = array<i32>} : memref<128x64xf32, #tpu.memory_space<vmem>>, vector<128x64xf32>,
    } else {
    }
    return
  }
  func.func @transform_0(%arg0: i32, %arg1: i32, %arg2: i32) -> (i32, i32) {
    %c0_i32 = arith.constant 0 : i32
    return %arg0, %arg2 : i32, i32
  }
  func.func @transform_1(%arg0: i32, %arg1: i32, %arg2: i32) -> (i32, i32) {
    %c0_i32 = arith.constant 0 : i32
    return %arg2, %arg1 : i32, i32
  }
  func.func @transform_2(%arg0: i32, %arg1: i32, %arg2: i32) -> (i32, i32) {
    %c0_i32 = arith.constant 0 : i32
    %c0_i32_0 = arith.constant 0 : i32
    return %c0_i32, %arg1 : i32, i32
  }
  func.func @transform_3(%arg0: i32, %arg1: i32, %arg2: i32) -> (i32, i32) {
    %c0_i32 = arith.constant 0 : i32
    return %arg0, %arg1 : i32, i32
  }
}

</mosaic_0001>

<llo_original>
// kernel: tpu_custom_call.1
$region0: #{tpu_custom_call.1}
  #allocation0 [shape = 'u32[]', space=smem, size = 0x4, offset = 0x4, fixed_abs, tag = 'smem constant byte address 0x4 - core index']
  #allocation1 [shape = 'u32[144,128]{1,0:T(1,128)}', space=vmem, size = 0x12000, scoped, tag = 'internal scratch']
  #allocation2 [shape = 'f32[128,64]{1,0:T(8,128)}', space=vmem, size = 0x10000, scoped, tag = 'scratch operand']
  %s0 = inlined_call_operand.vmem [shape: f32[128,32], index: 0, kind: input, shape index: {}]
  %s1 = inlined_call_operand.vmem [shape: f32[32,64], index: 1, kind: input, shape index: {}]
  %s2 = inlined_call_operand.vmem [shape: f32[1,64], index: 2, kind: input, shape index: {}]
  %s3 = inlined_call_operand.vmem [shape: f32[128,64], index: 3, kind: output, shape index: {}]
  %s4 = sld [smem:[#allocation0]]
  $region30: #{tpu_custom_call.1} parent=0
    _
  %s6 = ssub.s32 1, %s4
  %s7 = scalar_select 0, %s6, %s4
  // Predicated region
  $region2: #{tpu_custom_call.1} parent=0 // pred_check
    _
  $region3: #{tpu_custom_call.1} parent=0 // pred_check_branch
    %9 = sbr.rel (0) target = $region5
  $region4: #{tpu_custom_call.1} parent=0 // pred_region
    _
  $region5: #{tpu_custom_call.1} parent=0 // pred_fallthru
    _
  // Predicated region
  $region6: #{tpu_custom_call.1} parent=0 // pred_check
    _
  $region7: #{tpu_custom_call.1} parent=0 // pred_check_branch
    %11 = sbr.rel (0) target = $region9
  $region8: #{tpu_custom_call.1} parent=0 // pred_region
    _
  $region9: #{tpu_custom_call.1} parent=0 // pred_fallthru
    _
  // Predicated region
  $region10: #{tpu_custom_call.1} parent=0 // pred_check
    _
  $region11: #{tpu_custom_call.1} parent=0 // pred_check_branch
    %13 = sbr.rel (0) target = $region13
  $region12: #{tpu_custom_call.1} parent=0 // pred_region
    _
  $region13: #{tpu_custom_call.1} parent=0 // pred_fallthru
    _
  %p14 = scmp.eq.s32.totalorder 0, 0
  // Predicated region
  $region14: #{tpu_custom_call.1} parent=0 // pred_check
    %p15 = pneg %p14
  $region15: #{tpu_custom_call.1} parent=0 // pred_check_branch
    %17 = sbr.rel (%p15) target = $region17
  $region16: #{tpu_custom_call.1} parent=0 // pred_region
    %vm18 = vcmask 523264
    %19 = vst.msk [vmem:[#allocation2] sm:$0xff] %vm18, 0.0
    %20 = vst.msk [vmem:[#allocation2 + $0x8] sm:$0xff] %vm18, 0.0
    %21 = vst.msk [vmem:[#allocation2 + $0x10] sm:$0xff] %vm18, 0.0
    %22 = vst.msk [vmem:[#allocation2 + $0x18] sm:$0xff] %vm18, 0.0
    %23 = vst.msk [vmem:[#allocation2 + $0x20] sm:$0xff] %vm18, 0.0
    %24 = vst.msk [vmem:[#allocation2 + $0x28] sm:$0xff] %vm18, 0.0
    %25 = vst.msk [vmem:[#allocation2 + $0x30] sm:$0xff] %vm18, 0.0
    %26 = vst.msk [vmem:[#allocation2 + $0x38] sm:$0xff] %vm18, 0.0
    %27 = vst.msk [vmem:[#allocation2 + $0x40] sm:$0xff] %vm18, 0.0
    %28 = vst.msk [vmem:[#allocation2 + $0x48] sm:$0xff] %vm18, 0.0
    %29 = vst.msk [vmem:[#allocation2 + $0x50] sm:$0xff] %vm18, 0.0
    %30 = vst.msk [vmem:[#allocation2 + $0x58] sm:$0xff] %vm18, 0.0
    %31 = vst.msk [vmem:[#allocation2 + $0x60] sm:$0xff] %vm18, 0.0
    %32 = vst.msk [vmem:[#allocation2 + $0x68] sm:$0xff] %vm18, 0.0
    %33 = vst.msk [vmem:[#allocation2 + $0x70] sm:$0xff] %vm18, 0.0
    %34 = vst.msk [vmem:[#allocation2 + $0x78] sm:$0xff] %vm18, 0.0
  $region17: #{tpu_custom_call.1} parent=0 // pred_fallthru
    _
  %v35 = vld [vmem:[#allocation2] sm:$0xff]
  %v36 = vld [vmem:[#allocation2 + $0x8] sm:$0xff]
  %v37 = vld [vmem:[#allocation2 + $0x10] sm:$0xff]
  %v38 = vld [vmem:[#allocation2 + $0x18] sm:$0xff]
  %v39 = vld [vmem:[#allocation2 + $0x20] sm:$0xff]
  %v40 = vld [vmem:[#allocation2 + $0x28] sm:$0xff]
  %v41 = vld [vmem:[#allocation2 + $0x30] sm:$0xff]
  %v42 = vld [vmem:[#allocation2 + $0x38] sm:$0xff]
  %v43 = vld [vmem:[#allocation2 + $0x40] sm:$0xff]
  %v44 = vld [vmem:[#allocation2 + $0x48] sm:$0xff]
  %v45 = vld [vmem:[#allocation2 + $0x50] sm:$0xff]
  %v46 = vld [vmem:[#allocation2 + $0x58] sm:$0xff]
  %v47 = vld [vmem:[#allocation2 + $0x60] sm:$0xff]
  %v48 = vld [vmem:[#allocation2 + $0x68] sm:$0xff]
  %v49 = vld [vmem:[#allocation2 + $0x70] sm:$0xff]
  %v50 = vld [vmem:[#allocation2 + $0x78] sm:$0xff]
  %v51 = vld [vmem:[%s0] sm:$0xff]
  %v52 = vld [vmem:[%s0 + $0x8] sm:$0xff]
  %v53 = vld [vmem:[%s0 + $0x10] sm:$0xff]
  %v54 = vld [vmem:[%s0 + $0x18] sm:$0xff]
  %v55 = vld [vmem:[%s0 + $0x20] sm:$0xff]
  %v56 = vld [vmem:[%s0 + $0x28] sm:$0xff]
  %v57 = vld [vmem:[%s0 + $0x30] sm:$0xff]
  %v58 = vld [vmem:[%s0 + $0x38] sm:$0xff]
  %v59 = vld [vmem:[%s0 + $0x40] sm:$0xff]
  %v60 = vld [vmem:[%s0 + $0x48] sm:$0xff]
  %v61 = vld [vmem:[%s0 + $0x50] sm:$0xff]
  %v62 = vld [vmem:[%s0 + $0x58] sm:$0xff]
  %v63 = vld [vmem:[%s0 + $0x60] sm:$0xff]
  %v64 = vld [vmem:[%s0 + $0x68] sm:$0xff]
  %v65 = vld [vmem:[%s0 + $0x70] sm:$0xff]
  %v66 = vld [vmem:[%s0 + $0x78] sm:$0xff]
  %v67 = vld [vmem:[%s1] sm:$0xff]
  %v68 = vld [vmem:[%s1 + $0x8] sm:$0xff]
  %v69 = vld [vmem:[%s1 + $0x10] sm:$0xff]
  %v70 = vld [vmem:[%s1 + $0x18] sm:$0xff]
  %vm71 = vcmask 261120
  %v73 = vsel %vm71, %v51, 0
  %v76 = vsel %vm71, %v52, 0
  %v79 = vsel %vm71, %v53, 0
  %v82 = vsel %vm71, %v54, 0
  %v85 = vsel %vm71, %v55, 0
  %v88 = vsel %vm71, %v56, 0
  %v91 = vsel %vm71, %v57, 0
  %v94 = vsel %vm71, %v58, 0
  %v97 = vsel %vm71, %v59, 0
  %v100 = vsel %vm71, %v60, 0
  %v103 = vsel %vm71, %v61, 0
  %v106 = vsel %vm71, %v62, 0
  %v109 = vsel %vm71, %v63, 0
  %v112 = vsel %vm71, %v64, 0
  %v115 = vsel %vm71, %v65, 0
  %v118 = vsel %vm71, %v66, 0
  %120 = vmatprep.subr.mxu0 0.0
  %121 = vmatpush1.msra.mxu0 %v67
  %122 = vmatprep.subr.mxu0 0.0
  %123 = vmatpush1.msra.mxu0 %v68
  %124 = vmatprep.subr.mxu0 0.0
  %125 = vmatpush1.msra.mxu0 %v69
  %126 = vmatprep.subr.mxu0 0.0
  %127 = vmatpush1.msra.mxu0 %v70
  %128 = vmatprep.subr.mxu0 0.0
  %129 = vmatpush1.msra.mxu0 0.0
  %130 = vmatprep.subr.mxu0 0.0
  %131 = vmatpush1.msra.mxu0 0.0
  %132 = vmatprep.subr.mxu0 0.0
  %133 = vmatpush1.msra.mxu0 0.0
  %134 = vmatprep.subr.mxu0 0.0
  %135 = vmatpush1.msra.mxu0 0.0
  %136 = vmatprep.subr.mxu0 0.0
  %137 = vmatpush1.msra.mxu0 0.0
  %138 = vmatprep.subr.mxu0 0.0
  %139 = vmatpush1.msra.mxu0 0.0
  %140 = vmatprep.subr.mxu0 0.0
  %141 = vmatpush1.msra.mxu0 0.0
  %142 = vmatprep.subr.mxu0 0.0
  %143 = vmatpush1.msra.mxu0 0.0
  %144 = vmatprep.subr.mxu0 0.0
  %145 = vmatpush1.msra.mxu0 0.0
  %146 = vmatprep.subr.mxu0 0.0
  %147 = vmatpush1.msra.mxu0 0.0
  %148 = vmatprep.subr.mxu0 0.0
  %149 = vmatpush1.msra.mxu0 0.0
  %150 = vmatprep.subr.mxu0 0.0
  %151 = vmatpush1.msra.mxu0 0.0
  %152 = vmatprep.subr.mxu0 0.0
  %153 = vmatpush1.msra.mxu0 0.0
  %154 = vmatprep.subr.mxu0 0.0
  %155 = vmatpush1.msra.mxu0 0.0
  %156 = vmatprep.subr.mxu0 0.0
  %157 = vmatpush1.msra.mxu0 0.0
  %158 = vmatprep.subr.mxu0 0.0
  %159 = vmatpush1.msra.mxu0 0.0
  %160 = vmatprep.subr.mxu0 0.0
  %161 = vmatpush1.msra.mxu0 0.0
  %162 = vmatprep.subr.mxu0 0.0
  %163 = vmatpush1.msra.mxu0 0.0
  %164 = vmatprep.subr.mxu0 0.0
  %165 = vmatpush1.msra.mxu0 0.0
  %166 = vmatprep.subr.mxu0 0.0
  %167 = vmatpush1.msra.mxu0 0.0
  %168 = vmatprep.subr.mxu0 0.0
  %169 = vmatpush1.msra.mxu0 0.0
  %170 = vmatprep.subr.mxu0 0.0
  %171 = vmatpush1.msra.mxu0 0.0
  %172 = vmatprep.subr.mxu0 0.0
  %173 = vmatpush1.msra.mxu0 0.0
  %174 = vmatprep.subr.mxu0 0.0
  %175 = vmatpush1.msra.mxu0 0.0
  %176 = vmatprep.subr.mxu0 0.0
  %177 = vmatpush1.msra.mxu0 0.0
  %178 = vmatprep.subr.mxu0 0.0
  %179 = vmatpush1.msra.mxu0 0.0
  %180 = vmatprep.subr.mxu0 0.0
  %181 = vmatpush1.msra.mxu0 0.0
  %182 = vmatprep.subr.mxu0 0.0
  %183 = vmatpush1.msra.mxu0 0.0
  %184 = vmatprep.mubr.f32.mxu0 0.0
  %185 = vmatmul.mubr.f32.gmra.mrb[0].mxu0 %v73
  %v186 = vpop.f32.mrb[0].mxu0
  %v187 = vadd.f32 0.0, %v186
  %v188 = vpop.f32.mrb[0].mxu0
  %189 = vmatprep.mubr.f32.mxu0 0.0
  %190 = vmatmul.mubr.f32.gmra.mrb[0].mxu0 %v76
  %v191 = vpop.f32.mrb[0].mxu0
  %v192 = vadd.f32 0.0, %v191
  %v193 = vpop.f32.mrb[0].mxu0
  %194 = vmatprep.mubr.f32.mxu0 0.0
  %195 = vmatmul.mubr.f32.gmra.mrb[0].mxu0 %v79
  %v196 = vpop.f32.mrb[0].mxu0
  %v197 = vadd.f32 0.0, %v196
  %v198 = vpop.f32.mrb[0].mxu0
  %199 = vmatprep.mubr.f32.mxu0 0.0
  %200 = vmatmul.mubr.f32.gmra.mrb[0].mxu0 %v82
  %v201 = vpop.f32.mrb[0].mxu0
  %v202 = vadd.f32 0.0, %v201
  %v203 = vpop.f32.mrb[0].mxu0
  %204 = vmatprep.mubr.f32.mxu0 0.0
  %205 = vmatmul.mubr.f32.gmra.mrb[0].mxu0 %v85
  %v206 = vpop.f32.mrb[0].mxu0
  %v207 = vadd.f32 0.0, %v206
  %v208 = vpop.f32.mrb[0].mxu0
  %209 = vmatprep.mubr.f32.mxu0 0.0
  %210 = vmatmul.mubr.f32.gmra.mrb[0].mxu0 %v88
  %v211 = vpop.f32.mrb[0].mxu0
  %v212 = vadd.f32 0.0, %v211
  %v213 = vpop.f32.mrb[0].mxu0
  %214 = vmatprep.mubr.f32.mxu0 0.0
  %215 = vmatmul.mubr.f32.gmra.mrb[0].mxu0 %v91
  %v216 = vpop.f32.mrb[0].mxu0
  %v217 = vadd.f32 0.0, %v216
  %v218 = vpop.f32.mrb[0].mxu0
  %219 = vmatprep.mubr.f32.mxu0 0.0
  %220 = vmatmul.mubr.f32.gmra.mrb[0].mxu0 %v94
  %v221 = vpop.f32.mrb[0].mxu0
  %v222 = vadd.f32 0.0, %v221
  %v223 = vpop.f32.mrb[0].mxu0
  %224 = vmatprep.mubr.f32.mxu0 0.0
  %225 = vmatmul.mubr.f32.gmra.mrb[0].mxu0 %v97
  %v226 = vpop.f32.mrb[0].mxu0
  %v227 = vadd.f32 0.0, %v226
  %v228 = vpop.f32.mrb[0].mxu0
  %229 = vmatprep.mubr.f32.mxu0 0.0
  %230 = vmatmul.mubr.f32.gmra.mrb[0].mxu0 %v100
  %v231 = vpop.f32.mrb[0].mxu0
  %v232 = vadd.f32 0.0, %v231
  %v233 = vpop.f32.mrb[0].mxu0
  %234 = vmatprep.mubr.f32.mxu0 0.0
  %235 = vmatmul.mubr.f32.gmra.mrb[0].mxu0 %v103
  %v236 = vpop.f32.mrb[0].mxu0
  %v237 = vadd.f32 0.0, %v236
  %v238 = vpop.f32.mrb[0].mxu0
  %239 = vmatprep.mubr.f32.mxu0 0.0
  %240 = vmatmul.mubr.f32.gmra.mrb[0].mxu0 %v106
  %v241 = vpop.f32.mrb[0].mxu0
  %v242 = vadd.f32 0.0, %v241
  %v243 = vpop.f32.mrb[0].mxu0
  %244 = vmatprep.mubr.f32.mxu0 0.0
  %245 = vmatmul.mubr.f32.gmra.mrb[0].mxu0 %v109
  %v246 = vpop.f32.mrb[0].mxu0
  %v247 = vadd.f32 0.0, %v246
  %v248 = vpop.f32.mrb[0].mxu0
  %249 = vmatprep.mubr.f32.mxu0 0.0
  %250 = vmatmul.mubr.f32.gmra.mrb[0].mxu0 %v112
  %v251 = vpop.f32.mrb[0].mxu0
  %v252 = vadd.f32 0.0, %v251
  %v253 = vpop.f32.mrb[0].mxu0
  %254 = vmatprep.mubr.f32.mxu0 0.0
  %255 = vmatmul.mubr.f32.gmra.mrb[0].mxu0 %v115
  %v256 = vpop.f32.mrb[0].mxu0
  %v257 = vadd.f32 0.0, %v256
  %v258 = vpop.f32.mrb[0].mxu0
  %259 = vmatprep.mubr.f32.mxu0 0.0
  %260 = vmatmul.mubr.f32.gmra.mrb[0].mxu0 %v118
  %v261 = vpop.f32.mrb[0].mxu0
  %v262 = vadd.f32 0.0, %v261
  %v263 = vpop.f32.mrb[0].mxu0
  %264 = vdwg.mxu0
  %v265 = vadd.f32 %v35, %v187
  %v266 = vadd.f32 %v36, %v192
  %v267 = vadd.f32 %v37, %v197
  %v268 = vadd.f32 %v38, %v202
  %v269 = vadd.f32 %v39, %v207
  %v270 = vadd.f32 %v40, %v212
  %v271 = vadd.f32 %v41, %v217
  %v272 = vadd.f32 %v42, %v222
  %v273 = vadd.f32 %v43, %v227
  %v274 = vadd.f32 %v44, %v232
  %v275 = vadd.f32 %v45, %v237
  %v276 = vadd.f32 %v46, %v242
  %v277 = vadd.f32 %v47, %v247
  %v278 = vadd.f32 %v48, %v252
  %v279 = vadd.f32 %v49, %v257
  %v280 = vadd.f32 %v50, %v262
  %vm281 = vcmask 523264
  %282 = vst.msk [vmem:[#allocation2] sm:$0xff] %vm281, %v265
  %283 = vst.msk [vmem:[#allocation2 + $0x8] sm:$0xff] %vm281, %v266
  %284 = vst.msk [vmem:[#allocation2 + $0x10] sm:$0xff] %vm281, %v267
  %285 = vst.msk [vmem:[#allocation2 + $0x18] sm:$0xff] %vm281, %v268
  %286 = vst.msk [vmem:[#allocation2 + $0x20] sm:$0xff] %vm281, %v269
  %287 = vst.msk [vmem:[#allocation2 + $0x28] sm:$0xff] %vm281, %v270
  %288 = vst.msk [vmem:[#allocation2 + $0x30] sm:$0xff] %vm281, %v271
  %289 = vst.msk [vmem:[#allocation2 + $0x38] sm:$0xff] %vm281, %v272
  %290 = vst.msk [vmem:[#allocation2 + $0x40] sm:$0xff] %vm281, %v273
  %291 = vst.msk [vmem:[#allocation2 + $0x48] sm:$0xff] %vm281, %v274
  %292 = vst.msk [vmem:[#allocation2 + $0x50] sm:$0xff] %vm281, %v275
  %293 = vst.msk [vmem:[#allocation2 + $0x58] sm:$0xff] %vm281, %v276
  %294 = vst.msk [vmem:[#allocation2 + $0x60] sm:$0xff] %vm281, %v277
  %295 = vst.msk [vmem:[#allocation2 + $0x68] sm:$0xff] %vm281, %v278
  %296 = vst.msk [vmem:[#allocation2 + $0x70] sm:$0xff] %vm281, %v279
  %297 = vst.msk [vmem:[#allocation2 + $0x78] sm:$0xff] %vm281, %v280
  // Predicated region
  $region18: #{tpu_custom_call.1} parent=0 // pred_check
    %p298 = pneg %p14
  $region19: #{tpu_custom_call.1} parent=0 // pred_check_branch
    %300 = sbr.rel (%p298) target = $region21
  $region20: #{tpu_custom_call.1} parent=0 // pred_region
    %v301 = vld [vmem:[#allocation2] sm:$0xff]
    %v302 = vld [vmem:[#allocation2 + $0x8] sm:$0xff]
    %v303 = vld [vmem:[#allocation2 + $0x10] sm:$0xff]
    %v304 = vld [vmem:[#allocation2 + $0x18] sm:$0xff]
    %v305 = vld [vmem:[#allocation2 + $0x20] sm:$0xff]
    %v306 = vld [vmem:[#allocation2 + $0x28] sm:$0xff]
    %v307 = vld [vmem:[#allocation2 + $0x30] sm:$0xff]
    %v308 = vld [vmem:[#allocation2 + $0x38] sm:$0xff]
    %v309 = vld [vmem:[#allocation2 + $0x40] sm:$0xff]
    %v310 = vld [vmem:[#allocation2 + $0x48] sm:$0xff]
    %v311 = vld [vmem:[#allocation2 + $0x50] sm:$0xff]
    %v312 = vld [vmem:[#allocation2 + $0x58] sm:$0xff]
    %v313 = vld [vmem:[#allocation2 + $0x60] sm:$0xff]
    %v314 = vld [vmem:[#allocation2 + $0x68] sm:$0xff]
    %v315 = vld [vmem:[#allocation2 + $0x70] sm:$0xff]
    %v316 = vld [vmem:[#allocation2 + $0x78] sm:$0xff]
    %v317 = vld [vmem:[%s2] sm:$0x1]
    %v319 = vlaneseq
    %v320 = vshrl.u32 %v319, 7
    %v321 = vsub.s32 0, %v320
    %v322 = vrot.slane %v317, %v321
    %v324 = vadd.f32 %v301, %v322
    %v325 = vadd.f32 %v302, %v322
    %v326 = vadd.f32 %v303, %v322
    %v327 = vadd.f32 %v304, %v322
    %v328 = vadd.f32 %v305, %v322
    %v329 = vadd.f32 %v306, %v322
    %v330 = vadd.f32 %v307, %v322
    %v331 = vadd.f32 %v308, %v322
    %v332 = vadd.f32 %v309, %v322
    %v333 = vadd.f32 %v310, %v322
    %v334 = vadd.f32 %v311, %v322
    %v335 = vadd.f32 %v312, %v322
    %v336 = vadd.f32 %v313, %v322
    %v337 = vadd.f32 %v314, %v322
    %v338 = vadd.f32 %v315, %v322
    %v339 = vadd.f32 %v316, %v322
    %v340 = vmul.f32 %v324, 30.0
    %v341 = vmul.f32 %v325, 30.0
    %v342 = vmul.f32 %v326, 30.0
    %v343 = vmul.f32 %v327, 30.0
    %v344 = vmul.f32 %v328, 30.0
    %v345 = vmul.f32 %v329, 30.0
    %v346 = vmul.f32 %v330, 30.0
    %v347 = vmul.f32 %v331, 30.0
    %v348 = vmul.f32 %v332, 30.0
    %v349 = vmul.f32 %v333, 30.0
    %v350 = vmul.f32 %v334, 30.0
    %v351 = vmul.f32 %v335, 30.0
    %v352 = vmul.f32 %v336, 30.0
    %v353 = vmul.f32 %v337, 30.0
    %v354 = vmul.f32 %v338, 30.0
    %v355 = vmul.f32 %v339, 30.0
    %v356 = vand.u32 2147483647, %v340
    %vm357 = vcmp.le.f32.partialorder %v356, 0.7853982
    %vm358 = vcmp.lt.s32.totalorder %v340, 0
    %v359 = vand.u32 %v340, 2139095040
    %v360 = vshrl.u32 %v359, 23
    %v361 = vsub.s32 %v360, 127
    %v362 = vand.u32 2147483647, %v340
    %v363 = vand.u32 %v362, 8388607
    %v364 = vor.u32 %v363, 8388608
    %v365 = vsub.s32 0, %v364
    %v366 = vadd.s32 %v361, 1
    %vm367 = vcmp.gt.s32.totalorder %v366, 0
    %v368 = vsel %vm367, %v366, 0
    %v369 = vshrl.u32 %v368, 5
    %v370 = vand.u32 %v368, 31
    %v371 = vsub.s32 32, %v370
    %v372 = vshrl.u32 683565275, %v371
    %v373 = vshll.u32 683565275, %v370
    %v374 = vshrl.u32 2475754826, %v371
    %v375 = vor.u32 %v373, %v374
    %v376 = vshll.u32 2475754826, %v370
    %v377 = vshrl.u32 2131351028, %v371
    %v378 = vor.u32 %v376, %v377
    %v379 = vshll.u32 2131351028, %v370
    %v380 = vshrl.u32 2102212464, %v371
    %v381 = vor.u32 %v379, %v380
    %v382 = vshll.u32 2102212464, %v370
    %v383 = vshrl.u32 920167782, %v371
    %v384 = vor.u32 %v382, %v383
    %v385 = vshll.u32 920167782, %v370
    %v386 = vshrl.u32 1326507024, %v371
    %v387 = vor.u32 %v385, %v386
    %vm388 = vcmp.lt.s32.totalorder %v369, 1
    %vm389 = vcmp.lt.s32.totalorder %v369, 2
    %vm390 = vcmp.lt.s32.totalorder %v369, 3
    %vm391 = vcmp.lt.s32.totalorder %v369, 4
    %v392 = vsel %vm388, %v372, %v375
    %v393 = vsel %vm391, %v381, 2102212464
    %v394 = vsel %vm390, %v378, %v393
    %v395 = vsel %vm389, %v392, %v394
    %v396 = vsel %vm388, %v375, %v378
    %v397 = vsel %vm391, %v384, 920167782
    %v398 = vsel %vm390, %v381, %v397
    %v399 = vsel %vm389, %v396, %v398
    %v400 = vsel %vm388, %v378, %v381
    %v401 = vsel %vm391, %v387, 1326507024
    %v402 = vsel %vm390, %v384, %v401
    %v403 = vsel %vm389, %v400, %v402
    %v404 = vshll.u32 %v364, 8
    %v405 = vmul.u32.u64.compose %v404, %v403
    %v406 = vextract.low.u32 %v405
    %v407 = vextract.high.u32 %v405
    %v408 = vmul.u32.u64.compose %v404, %v399
    %v409 = vextract.low.u32 %v408
    %v410 = vextract.high.u32 %v408
    %v411 = vmul.u32 %v404, %v395
    %v412 = vadd.s32 %v407, %v409
    %vm413 = vc.u32 %v407, %v409
    %v414 = vadd.s32 %v410, 1
    %v415 = vsel %vm413, %v414, %v410
    %v416 = vadd.s32 %v411, %v415
    %v417 = vadd.s32 %v416, 536870912
    %v418 = vshrl.u32 %v417, 30
    %v419 = vshll.u32 %v418, 30
    %v420 = vsub.s32 %v416, %v419
    %vm421 = vcmp.lt.s32.totalorder %v420, 0
    %v422 = vsub.s32 0, %v420
    %v423 = vsel %vm421, %v422, %v420
    %v424 = vclz %v423
    %v425 = vsub.s32 %v424, 2
    %vm426 = vcmp.gt.s32.totalorder 0, %v425
    %v427 = vsel %vm426, 0, %v425
    %v428 = vsub.s32 32, %v427
    %v429 = vshll.u32 %v420, %v427
    %v430 = vshrl.u32 %v412, %v428
    %v431 = vor.u32 %v429, %v430
    %v432 = vsub.s32 4294967266, %v427
    %v433 = vadd.s32 %v432, 127
    %v434 = vshll.u32 %v433, 23
    %v435 = vor.u32 4788187, %v434
    %v436 = vand.u32 2147483647, %v435
    %v438 = vcvt.s32.f32 %v431
    %v439 = vmul.f32 %v438, %v436
    %v440 = vxor.u32 %v439, 2147483648
    %v441 = vsel %vm358, %v440, %v439
    %v442 = vsub.s32 4, %v418
    %v443 = vsel %vm358, %v442, %v418
    %v444 = vsel %vm357, %v340, %v441
    %v445 = vsel %vm357, 0, %v443
    %v446 = vcosq.f32.pop %v444
    %v447 = vsinq.f32.pop %v444
    %vm448 = vweird.f32 %v340
    %v449 = vadd.s32 %v445, 3
    %v450 = vand.u32 %v449, 3
    %vm451 = vcmp.lt.s32.totalorder %v450, 2
    %vm452 = vcmp.eq.s32.totalorder %v450, 0
    %v453 = vxor.u32 %v447, 2147483648
    %v454 = vsel %vm452, %v446, %v453
    %vm455 = vcmp.eq.s32.totalorder %v450, 2
    %v456 = vxor.u32 %v446, 2147483648
    %v457 = vsel %vm455, %v456, %v447
    %v458 = vsel %vm451, %v454, %v457
    %v459 = vsel %vm448, nan, %v458
    %v460 = vand.u32 2147483647, %v341
    %vm461 = vcmp.le.f32.partialorder %v460, 0.7853982
    %vm462 = vcmp.lt.s32.totalorder %v341, 0
    %v463 = vand.u32 %v341, 2139095040
    %v464 = vshrl.u32 %v463, 23
    %v465 = vsub.s32 %v464, 127
    %v466 = vand.u32 2147483647, %v341
    %v467 = vand.u32 %v466, 8388607
    %v468 = vor.u32 %v467, 8388608
    %v469 = vsub.s32 0, %v468
    %v470 = vadd.s32 %v465, 1
    %vm471 = vcmp.gt.s32.totalorder %v470, 0
    %v472 = vsel %vm471, %v470, 0
    %v473 = vshrl.u32 %v472, 5
    %v474 = vand.u32 %v472, 31
    %v475 = vsub.s32 32, %v474
    %v476 = vshrl.u32 683565275, %v475
    %v477 = vshll.u32 683565275, %v474
    %v478 = vshrl.u32 2475754826, %v475
    %v479 = vor.u32 %v477, %v478
    %v480 = vshll.u32 2475754826, %v474
    %v481 = vshrl.u32 2131351028, %v475
    %v482 = vor.u32 %v480, %v481
    %v483 = vshll.u32 2131351028, %v474
    %v484 = vshrl.u32 2102212464, %v475
    %v485 = vor.u32 %v483, %v484
    %v486 = vshll.u32 2102212464, %v474
    %v487 = vshrl.u32 920167782, %v475
    %v488 = vor.u32 %v486, %v487
    %v489 = vshll.u32 920167782, %v474
    %v490 = vshrl.u32 1326507024, %v475
    %v491 = vor.u32 %v489, %v490
    %vm492 = vcmp.lt.s32.totalorder %v473, 1
    %vm493 = vcmp.lt.s32.totalorder %v473, 2
    %vm494 = vcmp.lt.s32.totalorder %v473, 3
    %vm495 = vcmp.lt.s32.totalorder %v473, 4
    %v496 = vsel %vm492, %v476, %v479
    %v497 = vsel %vm495, %v485, 2102212464
    %v498 = vsel %vm494, %v482, %v497
    %v499 = vsel %vm493, %v496, %v498
    %v500 = vsel %vm492, %v479, %v482
    %v501 = vsel %vm495, %v488, 920167782
    %v502 = vsel %vm494, %v485, %v501
    %v503 = vsel %vm493, %v500, %v502
    %v504 = vsel %vm492, %v482, %v485
    %v505 = vsel %vm495, %v491, 1326507024
    %v506 = vsel %vm494, %v488, %v505
    %v507 = vsel %vm493, %v504, %v506
    %v508 = vshll.u32 %v468, 8
    %v509 = vmul.u32.u64.compose %v508, %v507
    %v510 = vextract.low.u32 %v509
    %v511 = vextract.high.u32 %v509
    %v512 = vmul.u32.u64.compose %v508, %v503
    %v513 = vextract.low.u32 %v512
    %v514 = vextract.high.u32 %v512
    %v515 = vmul.u32 %v508, %v499
    %v516 = vadd.s32 %v511, %v513
    %vm517 = vc.u32 %v511, %v513
    %v518 = vadd.s32 %v514, 1
    %v519 = vsel %vm517, %v518, %v514
    %v520 = vadd.s32 %v515, %v519
    %v521 = vadd.s32 %v520, 536870912
    %v522 = vshrl.u32 %v521, 30
    %v523 = vshll.u32 %v522, 30
    %v524 = vsub.s32 %v520, %v523
    %vm525 = vcmp.lt.s32.totalorder %v524, 0
    %v526 = vsub.s32 0, %v524
    %v527 = vsel %vm525, %v526, %v524
    %v528 = vclz %v527
    %v529 = vsub.s32 %v528, 2
    %vm530 = vcmp.gt.s32.totalorder 0, %v529
    %v531 = vsel %vm530, 0, %v529
    %v532 = vsub.s32 32, %v531
    %v533 = vshll.u32 %v524, %v531
    %v534 = vshrl.u32 %v516, %v532
    %v535 = vor.u32 %v533, %v534
    %v536 = vsub.s32 4294967266, %v531
    %v537 = vadd.s32 %v536, 127
    %v538 = vshll.u32 %v537, 23
    %v539 = vor.u32 4788187, %v538
    %v540 = vand.u32 2147483647, %v539
    %v542 = vcvt.s32.f32 %v535
    %v543 = vmul.f32 %v542, %v540
    %v544 = vxor.u32 %v543, 2147483648
    %v545 = vsel %vm462, %v544, %v543
    %v546 = vsub.s32 4, %v522
    %v547 = vsel %vm462, %v546, %v522
    %v548 = vsel %vm461, %v341, %v545
    %v549 = vsel %vm461, 0, %v547
    %v550 = vcosq.f32.pop %v548
    %v551 = vsinq.f32.pop %v548
    %vm552 = vweird.f32 %v341
    %v553 = vadd.s32 %v549, 3
    %v554 = vand.u32 %v553, 3
    %vm555 = vcmp.lt.s32.totalorder %v554, 2
    %vm556 = vcmp.eq.s32.totalorder %v554, 0
    %v557 = vxor.u32 %v551, 2147483648
    %v558 = vsel %vm556, %v550, %v557
    %vm559 = vcmp.eq.s32.totalorder %v554, 2
    %v560 = vxor.u32 %v550, 2147483648
    %v561 = vsel %vm559, %v560, %v551
    %v562 = vsel %vm555, %v558, %v561
    %v563 = vsel %vm552, nan, %v562
    %v564 = vand.u32 2147483647, %v342
    %vm565 = vcmp.le.f32.partialorder %v564, 0.7853982
    %vm566 = vcmp.lt.s32.totalorder %v342, 0
    %v567 = vand.u32 %v342, 2139095040
    %v568 = vshrl.u32 %v567, 23
    %v569 = vsub.s32 %v568, 127
    %v570 = vand.u32 2147483647, %v342
    %v571 = vand.u32 %v570, 8388607
    %v572 = vor.u32 %v571, 8388608
    %v573 = vsub.s32 0, %v572
    %v574 = vadd.s32 %v569, 1
    %vm575 = vcmp.gt.s32.totalorder %v574, 0
    %v576 = vsel %vm575, %v574, 0
    %v577 = vshrl.u32 %v576, 5
    %v578 = vand.u32 %v576, 31
    %v579 = vsub.s32 32, %v578
    %v580 = vshrl.u32 683565275, %v579
    %v581 = vshll.u32 683565275, %v578
    %v582 = vshrl.u32 2475754826, %v579
    %v583 = vor.u32 %v581, %v582
    %v584 = vshll.u32 2475754826, %v578
    %v585 = vshrl.u32 2131351028, %v579
    %v586 = vor.u32 %v584, %v585
    %v587 = vshll.u32 2131351028, %v578
    %v588 = vshrl.u32 2102212464, %v579
    %v589 = vor.u32 %v587, %v588
    %v590 = vshll.u32 2102212464, %v578
    %v591 = vshrl.u32 920167782, %v579
    %v592 = vor.u32 %v590, %v591
    %v593 = vshll.u32 920167782, %v578
    %v594 = vshrl.u32 1326507024, %v579
    %v595 = vor.u32 %v593, %v594
    %vm596 = vcmp.lt.s32.totalorder %v577, 1
    %vm597 = vcmp.lt.s32.totalorder %v577, 2
    %vm598 = vcmp.lt.s32.totalorder %v577, 3
    %vm599 = vcmp.lt.s32.totalorder %v577, 4
    %v600 = vsel %vm596, %v580, %v583
    %v601 = vsel %vm599, %v589, 2102212464
    %v602 = vsel %vm598, %v586, %v601
    %v603 = vsel %vm597, %v600, %v602
    %v604 = vsel %vm596, %v583, %v586
    %v605 = vsel %vm599, %v592, 920167782
    %v606 = vsel %vm598, %v589, %v605
    %v607 = vsel %vm597, %v604, %v606
    %v608 = vsel %vm596, %v586, %v589
    %v609 = vsel %vm599, %v595, 1326507024
    %v610 = vsel %vm598, %v592, %v609
    %v611 = vsel %vm597, %v608, %v610
    %v612 = vshll.u32 %v572, 8
    %v613 = vmul.u32.u64.compose %v612, %v611
    %v614 = vextract.low.u32 %v613
    %v615 = vextract.high.u32 %v613
    %v616 = vmul.u32.u64.compose %v612, %v607
    %v617 = vextract.low.u32 %v616
    %v618 = vextract.high.u32 %v616
    %v619 = vmul.u32 %v612, %v603
    %v620 = vadd.s32 %v615, %v617
    %vm621 = vc.u32 %v615, %v617
    %v622 = vadd.s32 %v618, 1
    %v623 = vsel %vm621, %v622, %v618
    %v624 = vadd.s32 %v619, %v623
    %v625 = vadd.s32 %v624, 536870912
    %v626 = vshrl.u32 %v625, 30
    %v627 = vshll.u32 %v626, 30
    %v628 = vsub.s32 %v624, %v627
    %vm629 = vcmp.lt.s32.totalorder %v628, 0
    %v630 = vsub.s32 0, %v628
    %v631 = vsel %vm629, %v630, %v628
    %v632 = vclz %v631
    %v633 = vsub.s32 %v632, 2
    %vm634 = vcmp.gt.s32.totalorder 0, %v633
    %v635 = vsel %vm634, 0, %v633
    %v636 = vsub.s32 32, %v635
    %v637 = vshll.u32 %v628, %v635
    %v638 = vshrl.u32 %v620, %v636
    %v639 = vor.u32 %v637, %v638
    %v640 = vsub.s32 4294967266, %v635
    %v641 = vadd.s32 %v640, 127
    %v642 = vshll.u32 %v641, 23
    %v643 = vor.u32 4788187, %v642
    %v644 = vand.u32 2147483647, %v643
    %v646 = vcvt.s32.f32 %v639
    %v647 = vmul.f32 %v646, %v644
    %v648 = vxor.u32 %v647, 2147483648
    %v649 = vsel %vm566, %v648, %v647
    %v650 = vsub.s32 4, %v626
    %v651 = vsel %vm566, %v650, %v626
    %v652 = vsel %vm565, %v342, %v649
    %v653 = vsel %vm565, 0, %v651
    %v654 = vcosq.f32.pop %v652
    %v655 = vsinq.f32.pop %v652
    %vm656 = vweird.f32 %v342
    %v657 = vadd.s32 %v653, 3
    %v658 = vand.u32 %v657, 3
    %vm659 = vcmp.lt.s32.totalorder %v658, 2
    %vm660 = vcmp.eq.s32.totalorder %v658, 0
    %v661 = vxor.u32 %v655, 2147483648
    %v662 = vsel %vm660, %v654, %v661
    %vm663 = vcmp.eq.s32.totalorder %v658, 2
    %v664 = vxor.u32 %v654, 2147483648
    %v665 = vsel %vm663, %v664, %v655
    %v666 = vsel %vm659, %v662, %v665
    %v667 = vsel %vm656, nan, %v666
    %v668 = vand.u32 2147483647, %v343
    %vm669 = vcmp.le.f32.partialorder %v668, 0.7853982
    %vm670 = vcmp.lt.s32.totalorder %v343, 0
    %v671 = vand.u32 %v343, 2139095040
    %v672 = vshrl.u32 %v671, 23
    %v673 = vsub.s32 %v672, 127
    %v674 = vand.u32 2147483647, %v343
    %v675 = vand.u32 %v674, 8388607
    %v676 = vor.u32 %v675, 8388608
    %v677 = vsub.s32 0, %v676
    %v678 = vadd.s32 %v673, 1
    %vm679 = vcmp.gt.s32.totalorder %v678, 0
    %v680 = vsel %vm679, %v678, 0
    %v681 = vshrl.u32 %v680, 5
    %v682 = vand.u32 %v680, 31
    %v683 = vsub.s32 32, %v682
    %v684 = vshrl.u32 683565275, %v683
    %v685 = vshll.u32 683565275, %v682
    %v686 = vshrl.u32 2475754826, %v683
    %v687 = vor.u32 %v685, %v686
    %v688 = vshll.u32 2475754826, %v682
    %v689 = vshrl.u32 2131351028, %v683
    %v690 = vor.u32 %v688, %v689
    %v691 = vshll.u32 2131351028, %v682
    %v692 = vshrl.u32 2102212464, %v683
    %v693 = vor.u32 %v691, %v692
    %v694 = vshll.u32 2102212464, %v682
    %v695 = vshrl.u32 920167782, %v683
    %v696 = vor.u32 %v694, %v695
    %v697 = vshll.u32 920167782, %v682
    %v698 = vshrl.u32 1326507024, %v683
    %v699 = vor.u32 %v697, %v698
    %vm700 = vcmp.lt.s32.totalorder %v681, 1
    %vm701 = vcmp.lt.s32.totalorder %v681, 2
    %vm702 = vcmp.lt.s32.totalorder %v681, 3
    %vm703 = vcmp.lt.s32.totalorder %v681, 4
    %v704 = vsel %vm700, %v684, %v687
    %v705 = vsel %vm703, %v693, 2102212464
    %v706 = vsel %vm702, %v690, %v705
    %v707 = vsel %vm701, %v704, %v706
    %v708 = vsel %vm700, %v687, %v690
    %v709 = vsel %vm703, %v696, 920167782
    %v710 = vsel %vm702, %v693, %v709
    %v711 = vsel %vm701, %v708, %v710
    %v712 = vsel %vm700, %v690, %v693
    %v713 = vsel %vm703, %v699, 1326507024
    %v714 = vsel %vm702, %v696, %v713
    %v715 = vsel %vm701, %v712, %v714
    %v716 = vshll.u32 %v676, 8
    %v717 = vmul.u32.u64.compose %v716, %v715
    %v718 = vextract.low.u32 %v717
    %v719 = vextract.high.u32 %v717
    %v720 = vmul.u32.u64.compose %v716, %v711
    %v721 = vextract.low.u32 %v720
    %v722 = vextract.high.u32 %v720
    %v723 = vmul.u32 %v716, %v707
    %v724 = vadd.s32 %v719, %v721
    %vm725 = vc.u32 %v719, %v721
    %v726 = vadd.s32 %v722, 1
    %v727 = vsel %vm725, %v726, %v722
    %v728 = vadd.s32 %v723, %v727
    %v729 = vadd.s32 %v728, 536870912
    %v730 = vshrl.u32 %v729, 30
    %v731 = vshll.u32 %v730, 30
    %v732 = vsub.s32 %v728, %v731
    %vm733 = vcmp.lt.s32.totalorder %v732, 0
    %v734 = vsub.s32 0, %v732
    %v735 = vsel %vm733, %v734, %v732
    %v736 = vclz %v735
    %v737 = vsub.s32 %v736, 2
    %vm738 = vcmp.gt.s32.totalorder 0, %v737
    %v739 = vsel %vm738, 0, %v737
    %v740 = vsub.s32 32, %v739
    %v741 = vshll.u32 %v732, %v739
    %v742 = vshrl.u32 %v724, %v740
    %v743 = vor.u32 %v741, %v742
    %v744 = vsub.s32 4294967266, %v739
    %v745 = vadd.s32 %v744, 127
    %v746 = vshll.u32 %v745, 23
    %v747 = vor.u32 4788187, %v746
    %v748 = vand.u32 2147483647, %v747
    %v750 = vcvt.s32.f32 %v743
    %v751 = vmul.f32 %v750, %v748
    %v752 = vxor.u32 %v751, 2147483648
    %v753 = vsel %vm670, %v752, %v751
    %v754 = vsub.s32 4, %v730
    %v755 = vsel %vm670, %v754, %v730
    %v756 = vsel %vm669, %v343, %v753
    %v757 = vsel %vm669, 0, %v755
    %v758 = vcosq.f32.pop %v756
    %v759 = vsinq.f32.pop %v756
    %vm760 = vweird.f32 %v343
    %v761 = vadd.s32 %v757, 3
    %v762 = vand.u32 %v761, 3
    %vm763 = vcmp.lt.s32.totalorder %v762, 2
    %vm764 = vcmp.eq.s32.totalorder %v762, 0
    %v765 = vxor.u32 %v759, 2147483648
    %v766 = vsel %vm764, %v758, %v765
    %vm767 = vcmp.eq.s32.totalorder %v762, 2
    %v768 = vxor.u32 %v758, 2147483648
    %v769 = vsel %vm767, %v768, %v759
    %v770 = vsel %vm763, %v766, %v769
    %v771 = vsel %vm760, nan, %v770
    %v772 = vand.u32 2147483647, %v344
    %vm773 = vcmp.le.f32.partialorder %v772, 0.7853982
    %vm774 = vcmp.lt.s32.totalorder %v344, 0
    %v775 = vand.u32 %v344, 2139095040
    %v776 = vshrl.u32 %v775, 23
    %v777 = vsub.s32 %v776, 127
    %v778 = vand.u32 2147483647, %v344
    %v779 = vand.u32 %v778, 8388607
    %v780 = vor.u32 %v779, 8388608
    %v781 = vsub.s32 0, %v780
    %v782 = vadd.s32 %v777, 1
    %vm783 = vcmp.gt.s32.totalorder %v782, 0
    %v784 = vsel %vm783, %v782, 0
    %v785 = vshrl.u32 %v784, 5
    %v786 = vand.u32 %v784, 31
    %v787 = vsub.s32 32, %v786
    %v788 = vshrl.u32 683565275, %v787
    %v789 = vshll.u32 683565275, %v786
    %v790 = vshrl.u32 2475754826, %v787
    %v791 = vor.u32 %v789, %v790
    %v792 = vshll.u32 2475754826, %v786
    %v793 = vshrl.u32 2131351028, %v787
    %v794 = vor.u32 %v792, %v793
    %v795 = vshll.u32 2131351028, %v786
    %v796 = vshrl.u32 2102212464, %v787
    %v797 = vor.u32 %v795, %v796
    %v798 = vshll.u32 2102212464, %v786
    %v799 = vshrl.u32 920167782, %v787
    %v800 = vor.u32 %v798, %v799
    %v801 = vshll.u32 920167782, %v786
    %v802 = vshrl.u32 1326507024, %v787
    %v803 = vor.u32 %v801, %v802
    %vm804 = vcmp.lt.s32.totalorder %v785, 1
    %vm805 = vcmp.lt.s32.totalorder %v785, 2
    %vm806 = vcmp.lt.s32.totalorder %v785, 3
    %vm807 = vcmp.lt.s32.totalorder %v785, 4
    %v808 = vsel %vm804, %v788, %v791
    %v809 = vsel %vm807, %v797, 2102212464
    %v810 = vsel %vm806, %v794, %v809
    %v811 = vsel %vm805, %v808, %v810
    %v812 = vsel %vm804, %v791, %v794
    %v813 = vsel %vm807, %v800, 920167782
    %v814 = vsel %vm806, %v797, %v813
    %v815 = vsel %vm805, %v812, %v814
    %v816 = vsel %vm804, %v794, %v797
    %v817 = vsel %vm807, %v803, 1326507024
    %v818 = vsel %vm806, %v800, %v817
    %v819 = vsel %vm805, %v816, %v818
    %v820 = vshll.u32 %v780, 8
    %v821 = vmul.u32.u64.compose %v820, %v819
    %v822 = vextract.low.u32 %v821
    %v823 = vextract.high.u32 %v821
    %v824 = vmul.u32.u64.compose %v820, %v815
    %v825 = vextract.low.u32 %v824
    %v826 = vextract.high.u32 %v824
    %v827 = vmul.u32 %v820, %v811
    %v828 = vadd.s32 %v823, %v825
    %vm829 = vc.u32 %v823, %v825
    %v830 = vadd.s32 %v826, 1
    %v831 = vsel %vm829, %v830, %v826
    %v832 = vadd.s32 %v827, %v831
    %v833 = vadd.s32 %v832, 536870912
    %v834 = vshrl.u32 %v833, 30
    %v835 = vshll.u32 %v834, 30
    %v836 = vsub.s32 %v832, %v835
    %vm837 = vcmp.lt.s32.totalorder %v836, 0
    %v838 = vsub.s32 0, %v836
    %v839 = vsel %vm837, %v838, %v836
    %v840 = vclz %v839
    %v841 = vsub.s32 %v840, 2
    %vm842 = vcmp.gt.s32.totalorder 0, %v841
    %v843 = vsel %vm842, 0, %v841
    %v844 = vsub.s32 32, %v843
    %v845 = vshll.u32 %v836, %v843
    %v846 = vshrl.u32 %v828, %v844
    %v847 = vor.u32 %v845, %v846
    %v848 = vsub.s32 4294967266, %v843
    %v849 = vadd.s32 %v848, 127
    %v850 = vshll.u32 %v849, 23
    %v851 = vor.u32 4788187, %v850
    %v852 = vand.u32 2147483647, %v851
    %v854 = vcvt.s32.f32 %v847
    %v855 = vmul.f32 %v854, %v852
    %v856 = vxor.u32 %v855, 2147483648
    %v857 = vsel %vm774, %v856, %v855
    %v858 = vsub.s32 4, %v834
    %v859 = vsel %vm774, %v858, %v834
    %v860 = vsel %vm773, %v344, %v857
    %v861 = vsel %vm773, 0, %v859
    %v862 = vcosq.f32.pop %v860
    %v863 = vsinq.f32.pop %v860
    %vm864 = vweird.f32 %v344
    %v865 = vadd.s32 %v861, 3
    %v866 = vand.u32 %v865, 3
    %vm867 = vcmp.lt.s32.totalorder %v866, 2
    %vm868 = vcmp.eq.s32.totalorder %v866, 0
    %v869 = vxor.u32 %v863, 2147483648
    %v870 = vsel %vm868, %v862, %v869
    %vm871 = vcmp.eq.s32.totalorder %v866, 2
    %v872 = vxor.u32 %v862, 2147483648
    %v873 = vsel %vm871, %v872, %v863
    %v874 = vsel %vm867, %v870, %v873
    %v875 = vsel %vm864, nan, %v874
    %v876 = vand.u32 2147483647, %v345
    %vm877 = vcmp.le.f32.partialorder %v876, 0.7853982
    %vm878 = vcmp.lt.s32.totalorder %v345, 0
    %v879 = vand.u32 %v345, 2139095040
    %v880 = vshrl.u32 %v879, 23
    %v881 = vsub.s32 %v880, 127
    %v882 = vand.u32 2147483647, %v345
    %v883 = vand.u32 %v882, 8388607
    %v884 = vor.u32 %v883, 8388608
    %v885 = vsub.s32 0, %v884
    %v886 = vadd.s32 %v881, 1
    %vm887 = vcmp.gt.s32.totalorder %v886, 0
    %v888 = vsel %vm887, %v886, 0
    %v889 = vshrl.u32 %v888, 5
    %v890 = vand.u32 %v888, 31
    %v891 = vsub.s32 32, %v890
    %v892 = vshrl.u32 683565275, %v891
    %v893 = vshll.u32 683565275, %v890
    %v894 = vshrl.u32 2475754826, %v891
    %v895 = vor.u32 %v893, %v894
    %v896 = vshll.u32 2475754826, %v890
    %v897 = vshrl.u32 2131351028, %v891
    %v898 = vor.u32 %v896, %v897
    %v899 = vshll.u32 2131351028, %v890
    %v900 = vshrl.u32 2102212464, %v891
    %v901 = vor.u32 %v899, %v900
    %v902 = vshll.u32 2102212464, %v890
    %v903 = vshrl.u32 920167782, %v891
    %v904 = vor.u32 %v902, %v903
    %v905 = vshll.u32 920167782, %v890
    %v906 = vshrl.u32 1326507024, %v891
    %v907 = vor.u32 %v905, %v906
    %vm908 = vcmp.lt.s32.totalorder %v889, 1
    %vm909 = vcmp.lt.s32.totalorder %v889, 2
    %vm910 = vcmp.lt.s32.totalorder %v889, 3
    %vm911 = vcmp.lt.s32.totalorder %v889, 4
    %v912 = vsel %vm908, %v892, %v895
    %v913 = vsel %vm911, %v901, 2102212464
    %v914 = vsel %vm910, %v898, %v913
    %v915 = vsel %vm909, %v912, %v914
    %v916 = vsel %vm908, %v895, %v898
    %v917 = vsel %vm911, %v904, 920167782
    %v918 = vsel %vm910, %v901, %v917
    %v919 = vsel %vm909, %v916, %v918
    %v920 = vsel %vm908, %v898, %v901
    %v921 = vsel %vm911, %v907, 1326507024
    %v922 = vsel %vm910, %v904, %v921
    %v923 = vsel %vm909, %v920, %v922
    %v924 = vshll.u32 %v884, 8
    %v925 = vmul.u32.u64.compose %v924, %v923
    %v926 = vextract.low.u32 %v925
    %v927 = vextract.high.u32 %v925
    %v928 = vmul.u32.u64.compose %v924, %v919
    %v929 = vextract.low.u32 %v928
    %v930 = vextract.high.u32 %v928
    %v931 = vmul.u32 %v924, %v915
    %v932 = vadd.s32 %v927, %v929
    %vm933 = vc.u32 %v927, %v929
    %v934 = vadd.s32 %v930, 1
    %v935 = vsel %vm933, %v934, %v930
    %v936 = vadd.s32 %v931, %v935
    %v937 = vadd.s32 %v936, 536870912
    %v938 = vshrl.u32 %v937, 30
    %v939 = vshll.u32 %v938, 30
    %v940 = vsub.s32 %v936, %v939
    %vm941 = vcmp.lt.s32.totalorder %v940, 0
    %v942 = vsub.s32 0, %v940
    %v943 = vsel %vm941, %v942, %v940
    %v944 = vclz %v943
    %v945 = vsub.s32 %v944, 2
    %vm946 = vcmp.gt.s32.totalorder 0, %v945
    %v947 = vsel %vm946, 0, %v945
    %v948 = vsub.s32 32, %v947
    %v949 = vshll.u32 %v940, %v947
    %v950 = vshrl.u32 %v932, %v948
    %v951 = vor.u32 %v949, %v950
    %v952 = vsub.s32 4294967266, %v947
    %v953 = vadd.s32 %v952, 127
    %v954 = vshll.u32 %v953, 23
    %v955 = vor.u32 4788187, %v954
    %v956 = vand.u32 2147483647, %v955
    %v958 = vcvt.s32.f32 %v951
    %v959 = vmul.f32 %v958, %v956
    %v960 = vxor.u32 %v959, 2147483648
    %v961 = vsel %vm878, %v960, %v959
    %v962 = vsub.s32 4, %v938
    %v963 = vsel %vm878, %v962, %v938
    %v964 = vsel %vm877, %v345, %v961
    %v965 = vsel %vm877, 0, %v963
    %v966 = vcosq.f32.pop %v964
    %v967 = vsinq.f32.pop %v964
    %vm968 = vweird.f32 %v345
    %v969 = vadd.s32 %v965, 3
    %v970 = vand.u32 %v969, 3
    %vm971 = vcmp.lt.s32.totalorder %v970, 2
    %vm972 = vcmp.eq.s32.totalorder %v970, 0
    %v973 = vxor.u32 %v967, 2147483648
    %v974 = vsel %vm972, %v966, %v973
    %vm975 = vcmp.eq.s32.totalorder %v970, 2
    %v976 = vxor.u32 %v966, 2147483648
    %v977 = vsel %vm975, %v976, %v967
    %v978 = vsel %vm971, %v974, %v977
    %v979 = vsel %vm968, nan, %v978
    %v980 = vand.u32 2147483647, %v346
    %vm981 = vcmp.le.f32.partialorder %v980, 0.7853982
    %vm982 = vcmp.lt.s32.totalorder %v346, 0
    %v983 = vand.u32 %v346, 2139095040
    %v984 = vshrl.u32 %v983, 23
    %v985 = vsub.s32 %v984, 127
    %v986 = vand.u32 2147483647, %v346
    %v987 = vand.u32 %v986, 8388607
    %v988 = vor.u32 %v987, 8388608
    %v989 = vsub.s32 0, %v988
    %v990 = vadd.s32 %v985, 1
    %vm991 = vcmp.gt.s32.totalorder %v990, 0
    %v992 = vsel %vm991, %v990, 0
    %v993 = vshrl.u32 %v992, 5
    %v994 = vand.u32 %v992, 31
    %v995 = vsub.s32 32, %v994
    %v996 = vshrl.u32 683565275, %v995
    %v997 = vshll.u32 683565275, %v994
    %v998 = vshrl.u32 2475754826, %v995
    %v999 = vor.u32 %v997, %v998
    %v1000 = vshll.u32 2475754826, %v994
    %v1001 = vshrl.u32 2131351028, %v995
    %v1002 = vor.u32 %v1000, %v1001
    %v1003 = vshll.u32 2131351028, %v994
    %v1004 = vshrl.u32 2102212464, %v995
    %v1005 = vor.u32 %v1003, %v1004
    %v1006 = vshll.u32 2102212464, %v994
    %v1007 = vshrl.u32 920167782, %v995
    %v1008 = vor.u32 %v1006, %v1007
    %v1009 = vshll.u32 920167782, %v994
    %v1010 = vshrl.u32 1326507024, %v995
    %v1011 = vor.u32 %v1009, %v1010
    %vm1012 = vcmp.lt.s32.totalorder %v993, 1
    %vm1013 = vcmp.lt.s32.totalorder %v993, 2
    %vm1014 = vcmp.lt.s32.totalorder %v993, 3
    %vm1015 = vcmp.lt.s32.totalorder %v993, 4
    %v1016 = vsel %vm1012, %v996, %v999
    %v1017 = vsel %vm1015, %v1005, 2102212464
    %v1018 = vsel %vm1014, %v1002, %v1017
    %v1019 = vsel %vm1013, %v1016, %v1018
    %v1020 = vsel %vm1012, %v999, %v1002
    %v1021 = vsel %vm1015, %v1008, 920167782
    %v1022 = vsel %vm1014, %v1005, %v1021
    %v1023 = vsel %vm1013, %v1020, %v1022
    %v1024 = vsel %vm1012, %v1002, %v1005
    %v1025 = vsel %vm1015, %v1011, 1326507024
    %v1026 = vsel %vm1014, %v1008, %v1025
    %v1027 = vsel %vm1013, %v1024, %v1026
    %v1028 = vshll.u32 %v988, 8
    %v1029 = vmul.u32.u64.compose %v1028, %v1027
    %v1030 = vextract.low.u32 %v1029
    %v1031 = vextract.high.u32 %v1029
    %v1032 = vmul.u32.u64.compose %v1028, %v1023
    %v1033 = vextract.low.u32 %v1032
    %v1034 = vextract.high.u32 %v1032
    %v1035 = vmul.u32 %v1028, %v1019
    %v1036 = vadd.s32 %v1031, %v1033
    %vm1037 = vc.u32 %v1031, %v1033
    %v1038 = vadd.s32 %v1034, 1
    %v1039 = vsel %vm1037, %v1038, %v1034
    %v1040 = vadd.s32 %v1035, %v1039
    %v1041 = vadd.s32 %v1040, 536870912
    %v1042 = vshrl.u32 %v1041, 30
    %v1043 = vshll.u32 %v1042, 30
    %v1044 = vsub.s32 %v1040, %v1043
    %vm1045 = vcmp.lt.s32.totalorder %v1044, 0
    %v1046 = vsub.s32 0, %v1044
    %v1047 = vsel %vm1045, %v1046, %v1044
    %v1048 = vclz %v1047
    %v1049 = vsub.s32 %v1048, 2
    %vm1050 = vcmp.gt.s32.totalorder 0, %v1049
    %v1051 = vsel %vm1050, 0, %v1049
    %v1052 = vsub.s32 32, %v1051
    %v1053 = vshll.u32 %v1044, %v1051
    %v1054 = vshrl.u32 %v1036, %v1052
    %v1055 = vor.u32 %v1053, %v1054
    %v1056 = vsub.s32 4294967266, %v1051
    %v1057 = vadd.s32 %v1056, 127
    %v1058 = vshll.u32 %v1057, 23
    %v1059 = vor.u32 4788187, %v1058
    %v1060 = vand.u32 2147483647, %v1059
    %v1062 = vcvt.s32.f32 %v1055
    %v1063 = vmul.f32 %v1062, %v1060
    %v1064 = vxor.u32 %v1063, 2147483648
    %v1065 = vsel %vm982, %v1064, %v1063
    %v1066 = vsub.s32 4, %v1042
    %v1067 = vsel %vm982, %v1066, %v1042
    %v1068 = vsel %vm981, %v346, %v1065
    %v1069 = vsel %vm981, 0, %v1067
    %v1070 = vcosq.f32.pop %v1068
    %v1071 = vsinq.f32.pop %v1068
    %vm1072 = vweird.f32 %v346
    %v1073 = vadd.s32 %v1069, 3
    %v1074 = vand.u32 %v1073, 3
    %vm1075 = vcmp.lt.s32.totalorder %v1074, 2
    %vm1076 = vcmp.eq.s32.totalorder %v1074, 0
    %v1077 = vxor.u32 %v1071, 2147483648
    %v1078 = vsel %vm1076, %v1070, %v1077
    %vm1079 = vcmp.eq.s32.totalorder %v1074, 2
    %v1080 = vxor.u32 %v1070, 2147483648
    %v1081 = vsel %vm1079, %v1080, %v1071
    %v1082 = vsel %vm1075, %v1078, %v1081
    %v1083 = vsel %vm1072, nan, %v1082
    %v1084 = vand.u32 2147483647, %v347
    %vm1085 = vcmp.le.f32.partialorder %v1084, 0.7853982
    %vm1086 = vcmp.lt.s32.totalorder %v347, 0
    %v1087 = vand.u32 %v347, 2139095040
    %v1088 = vshrl.u32 %v1087, 23
    %v1089 = vsub.s32 %v1088, 127
    %v1090 = vand.u32 2147483647, %v347
    %v1091 = vand.u32 %v1090, 8388607
    %v1092 = vor.u32 %v1091, 8388608
    %v1093 = vsub.s32 0, %v1092
    %v1094 = vadd.s32 %v1089, 1
    %vm1095 = vcmp.gt.s32.totalorder %v1094, 0
    %v1096 = vsel %vm1095, %v1094, 0
    %v1097 = vshrl.u32 %v1096, 5
    %v1098 = vand.u32 %v1096, 31
    %v1099 = vsub.s32 32, %v1098
    %v1100 = vshrl.u32 683565275, %v1099
    %v1101 = vshll.u32 683565275, %v1098
    %v1102 = vshrl.u32 2475754826, %v1099
    %v1103 = vor.u32 %v1101, %v1102
    %v1104 = vshll.u32 2475754826, %v1098
    %v1105 = vshrl.u32 2131351028, %v1099
    %v1106 = vor.u32 %v1104, %v1105
    %v1107 = vshll.u32 2131351028, %v1098
    %v1108 = vshrl.u32 2102212464, %v1099
    %v1109 = vor.u32 %v1107, %v1108
    %v1110 = vshll.u32 2102212464, %v1098
    %v1111 = vshrl.u32 920167782, %v1099
    %v1112 = vor.u32 %v1110, %v1111
    %v1113 = vshll.u32 920167782, %v1098
    %v1114 = vshrl.u32 1326507024, %v1099
    %v1115 = vor.u32 %v1113, %v1114
    %vm1116 = vcmp.lt.s32.totalorder %v1097, 1
    %vm1117 = vcmp.lt.s32.totalorder %v1097, 2
    %vm1118 = vcmp.lt.s32.totalorder %v1097, 3
    %vm1119 = vcmp.lt.s32.totalorder %v1097, 4
    %v1120 = vsel %vm1116, %v1100, %v1103
    %v1121 = vsel %vm1119, %v1109, 2102212464
    %v1122 = vsel %vm1118, %v1106, %v1121
    %v1123 = vsel %vm1117, %v1120, %v1122
    %v1124 = vsel %vm1116, %v1103, %v1106
    %v1125 = vsel %vm1119, %v1112, 920167782
    %v1126 = vsel %vm1118, %v1109, %v1125
    %v1127 = vsel %vm1117, %v1124, %v1126
    %v1128 = vsel %vm1116, %v1106, %v1109
    %v1129 = vsel %vm1119, %v1115, 1326507024
    %v1130 = vsel %vm1118, %v1112, %v1129
    %v1131 = vsel %vm1117, %v1128, %v1130
    %v1132 = vshll.u32 %v1092, 8
    %v1133 = vmul.u32.u64.compose %v1132, %v1131
    %v1134 = vextract.low.u32 %v1133
    %v1135 = vextract.high.u32 %v1133
    %v1136 = vmul.u32.u64.compose %v1132, %v1127
    %v1137 = vextract.low.u32 %v1136
    %v1138 = vextract.high.u32 %v1136
    %v1139 = vmul.u32 %v1132, %v1123
    %v1140 = vadd.s32 %v1135, %v1137
    %vm1141 = vc.u32 %v1135, %v1137
    %v1142 = vadd.s32 %v1138, 1
    %v1143 = vsel %vm1141, %v1142, %v1138
    %v1144 = vadd.s32 %v1139, %v1143
    %v1145 = vadd.s32 %v1144, 536870912
    %v1146 = vshrl.u32 %v1145, 30
    %v1147 = vshll.u32 %v1146, 30
    %v1148 = vsub.s32 %v1144, %v1147
    %vm1149 = vcmp.lt.s32.totalorder %v1148, 0
    %v1150 = vsub.s32 0, %v1148
    %v1151 = vsel %vm1149, %v1150, %v1148
    %v1152 = vclz %v1151
    %v1153 = vsub.s32 %v1152, 2
    %vm1154 = vcmp.gt.s32.totalorder 0, %v1153
    %v1155 = vsel %vm1154, 0, %v1153
    %v1156 = vsub.s32 32, %v1155
    %v1157 = vshll.u32 %v1148, %v1155
    %v1158 = vshrl.u32 %v1140, %v1156
    %v1159 = vor.u32 %v1157, %v1158
    %v1160 = vsub.s32 4294967266, %v1155
    %v1161 = vadd.s32 %v1160, 127
    %v1162 = vshll.u32 %v1161, 23
    %v1163 = vor.u32 4788187, %v1162
    %v1164 = vand.u32 2147483647, %v1163
    %v1166 = vcvt.s32.f32 %v1159
    %v1167 = vmul.f32 %v1166, %v1164
    %v1168 = vxor.u32 %v1167, 2147483648
    %v1169 = vsel %vm1086, %v1168, %v1167
    %v1170 = vsub.s32 4, %v1146
    %v1171 = vsel %vm1086, %v1170, %v1146
    %v1172 = vsel %vm1085, %v347, %v1169
    %v1173 = vsel %vm1085, 0, %v1171
    %v1174 = vcosq.f32.pop %v1172
    %v1175 = vsinq.f32.pop %v1172
    %vm1176 = vweird.f32 %v347
    %v1177 = vadd.s32 %v1173, 3
    %v1178 = vand.u32 %v1177, 3
    %vm1179 = vcmp.lt.s32.totalorder %v1178, 2
    %vm1180 = vcmp.eq.s32.totalorder %v1178, 0
    %v1181 = vxor.u32 %v1175, 2147483648
    %v1182 = vsel %vm1180, %v1174, %v1181
    %vm1183 = vcmp.eq.s32.totalorder %v1178, 2
    %v1184 = vxor.u32 %v1174, 2147483648
    %v1185 = vsel %vm1183, %v1184, %v1175
    %v1186 = vsel %vm1179, %v1182, %v1185
    %v1187 = vsel %vm1176, nan, %v1186
    %v1188 = vand.u32 2147483647, %v348
    %vm1189 = vcmp.le.f32.partialorder %v1188, 0.7853982
    %vm1190 = vcmp.lt.s32.totalorder %v348, 0
    %v1191 = vand.u32 %v348, 2139095040
    %v1192 = vshrl.u32 %v1191, 23
    %v1193 = vsub.s32 %v1192, 127
    %v1194 = vand.u32 2147483647, %v348
    %v1195 = vand.u32 %v1194, 8388607
    %v1196 = vor.u32 %v1195, 8388608
    %v1197 = vsub.s32 0, %v1196
    %v1198 = vadd.s32 %v1193, 1
    %vm1199 = vcmp.gt.s32.totalorder %v1198, 0
    %v1200 = vsel %vm1199, %v1198, 0
    %v1201 = vshrl.u32 %v1200, 5
    %v1202 = vand.u32 %v1200, 31
    %v1203 = vsub.s32 32, %v1202
    %v1204 = vshrl.u32 683565275, %v1203
    %v1205 = vshll.u32 683565275, %v1202
    %v1206 = vshrl.u32 2475754826, %v1203
    %v1207 = vor.u32 %v1205, %v1206
    %v1208 = vshll.u32 2475754826, %v1202
    %v1209 = vshrl.u32 2131351028, %v1203
    %v1210 = vor.u32 %v1208, %v1209
    %v1211 = vshll.u32 2131351028, %v1202
    %v1212 = vshrl.u32 2102212464, %v1203
    %v1213 = vor.u32 %v1211, %v1212
    %v1214 = vshll.u32 2102212464, %v1202
    %v1215 = vshrl.u32 920167782, %v1203
    %v1216 = vor.u32 %v1214, %v1215
    %v1217 = vshll.u32 920167782, %v1202
    %v1218 = vshrl.u32 1326507024, %v1203
    %v1219 = vor.u32 %v1217, %v1218
    %vm1220 = vcmp.lt.s32.totalorder %v1201, 1
    %vm1221 = vcmp.lt.s32.totalorder %v1201, 2
    %vm1222 = vcmp.lt.s32.totalorder %v1201, 3
    %vm1223 = vcmp.lt.s32.totalorder %v1201, 4
    %v1224 = vsel %vm1220, %v1204, %v1207
    %v1225 = vsel %vm1223, %v1213, 2102212464
    %v1226 = vsel %vm1222, %v1210, %v1225
    %v1227 = vsel %vm1221, %v1224, %v1226
    %v1228 = vsel %vm1220, %v1207, %v1210
    %v1229 = vsel %vm1223, %v1216, 920167782
    %v1230 = vsel %vm1222, %v1213, %v1229
    %v1231 = vsel %vm1221, %v1228, %v1230
    %v1232 = vsel %vm1220, %v1210, %v1213
    %v1233 = vsel %vm1223, %v1219, 1326507024
    %v1234 = vsel %vm1222, %v1216, %v1233
    %v1235 = vsel %vm1221, %v1232, %v1234
    %v1236 = vshll.u32 %v1196, 8
    %v1237 = vmul.u32.u64.compose %v1236, %v1235
    %v1238 = vextract.low.u32 %v1237
    %v1239 = vextract.high.u32 %v1237
    %v1240 = vmul.u32.u64.compose %v1236, %v1231
    %v1241 = vextract.low.u32 %v1240
    %v1242 = vextract.high.u32 %v1240
    %v1243 = vmul.u32 %v1236, %v1227
    %v1244 = vadd.s32 %v1239, %v1241
    %vm1245 = vc.u32 %v1239, %v1241
    %v1246 = vadd.s32 %v1242, 1
    %v1247 = vsel %vm1245, %v1246, %v1242
    %v1248 = vadd.s32 %v1243, %v1247
    %v1249 = vadd.s32 %v1248, 536870912
    %v1250 = vshrl.u32 %v1249, 30
    %v1251 = vshll.u32 %v1250, 30
    %v1252 = vsub.s32 %v1248, %v1251
    %vm1253 = vcmp.lt.s32.totalorder %v1252, 0
    %v1254 = vsub.s32 0, %v1252
    %v1255 = vsel %vm1253, %v1254, %v1252
    %v1256 = vclz %v1255
    %v1257 = vsub.s32 %v1256, 2
    %vm1258 = vcmp.gt.s32.totalorder 0, %v1257
    %v1259 = vsel %vm1258, 0, %v1257
    %v1260 = vsub.s32 32, %v1259
    %v1261 = vshll.u32 %v1252, %v1259
    %v1262 = vshrl.u32 %v1244, %v1260
    %v1263 = vor.u32 %v1261, %v1262
    %v1264 = vsub.s32 4294967266, %v1259
    %v1265 = vadd.s32 %v1264, 127
    %v1266 = vshll.u32 %v1265, 23
    %v1267 = vor.u32 4788187, %v1266
    %v1268 = vand.u32 2147483647, %v1267
    %v1270 = vcvt.s32.f32 %v1263
    %v1271 = vmul.f32 %v1270, %v1268
    %v1272 = vxor.u32 %v1271, 2147483648
    %v1273 = vsel %vm1190, %v1272, %v1271
    %v1274 = vsub.s32 4, %v1250
    %v1275 = vsel %vm1190, %v1274, %v1250
    %v1276 = vsel %vm1189, %v348, %v1273
    %v1277 = vsel %vm1189, 0, %v1275
    %v1278 = vcosq.f32.pop %v1276
    %v1279 = vsinq.f32.pop %v1276
    %vm1280 = vweird.f32 %v348
    %v1281 = vadd.s32 %v1277, 3
    %v1282 = vand.u32 %v1281, 3
    %vm1283 = vcmp.lt.s32.totalorder %v1282, 2
    %vm1284 = vcmp.eq.s32.totalorder %v1282, 0
    %v1285 = vxor.u32 %v1279, 2147483648
    %v1286 = vsel %vm1284, %v1278, %v1285
    %vm1287 = vcmp.eq.s32.totalorder %v1282, 2
    %v1288 = vxor.u32 %v1278, 2147483648
    %v1289 = vsel %vm1287, %v1288, %v1279
    %v1290 = vsel %vm1283, %v1286, %v1289
    %v1291 = vsel %vm1280, nan, %v1290
    %v1292 = vand.u32 2147483647, %v349
    %vm1293 = vcmp.le.f32.partialorder %v1292, 0.7853982
    %vm1294 = vcmp.lt.s32.totalorder %v349, 0
    %v1295 = vand.u32 %v349, 2139095040
    %v1296 = vshrl.u32 %v1295, 23
    %v1297 = vsub.s32 %v1296, 127
    %v1298 = vand.u32 2147483647, %v349
    %v1299 = vand.u32 %v1298, 8388607
    %v1300 = vor.u32 %v1299, 8388608
    %v1301 = vsub.s32 0, %v1300
    %v1302 = vadd.s32 %v1297, 1
    %vm1303 = vcmp.gt.s32.totalorder %v1302, 0
    %v1304 = vsel %vm1303, %v1302, 0
    %v1305 = vshrl.u32 %v1304, 5
    %v1306 = vand.u32 %v1304, 31
    %v1307 = vsub.s32 32, %v1306
    %v1308 = vshrl.u32 683565275, %v1307
    %v1309 = vshll.u32 683565275, %v1306
    %v1310 = vshrl.u32 2475754826, %v1307
    %v1311 = vor.u32 %v1309, %v1310
    %v1312 = vshll.u32 2475754826, %v1306
    %v1313 = vshrl.u32 2131351028, %v1307
    %v1314 = vor.u32 %v1312, %v1313
    %v1315 = vshll.u32 2131351028, %v1306
    %v1316 = vshrl.u32 2102212464, %v1307
    %v1317 = vor.u32 %v1315, %v1316
    %v1318 = vshll.u32 2102212464, %v1306
    %v1319 = vshrl.u32 920167782, %v1307
    %v1320 = vor.u32 %v1318, %v1319
    %v1321 = vshll.u32 920167782, %v1306
    %v1322 = vshrl.u32 1326507024, %v1307
    %v1323 = vor.u32 %v1321, %v1322
    %vm1324 = vcmp.lt.s32.totalorder %v1305, 1
    %vm1325 = vcmp.lt.s32.totalorder %v1305, 2
    %vm1326 = vcmp.lt.s32.totalorder %v1305, 3
    %vm1327 = vcmp.lt.s32.totalorder %v1305, 4
    %v1328 = vsel %vm1324, %v1308, %v1311
    %v1329 = vsel %vm1327, %v1317, 2102212464
    %v1330 = vsel %vm1326, %v1314, %v1329
    %v1331 = vsel %vm1325, %v1328, %v1330
    %v1332 = vsel %vm1324, %v1311, %v1314
    %v1333 = vsel %vm1327, %v1320, 920167782
    %v1334 = vsel %vm1326, %v1317, %v1333
    %v1335 = vsel %vm1325, %v1332, %v1334
    %v1336 = vsel %vm1324, %v1314, %v1317
    %v1337 = vsel %vm1327, %v1323, 1326507024
    %v1338 = vsel %vm1326, %v1320, %v1337
    %v1339 = vsel %vm1325, %v1336, %v1338
    %v1340 = vshll.u32 %v1300, 8
    %v1341 = vmul.u32.u64.compose %v1340, %v1339
    %v1342 = vextract.low.u32 %v1341
    %v1343 = vextract.high.u32 %v1341
    %v1344 = vmul.u32.u64.compose %v1340, %v1335
    %v1345 = vextract.low.u32 %v1344
    %v1346 = vextract.high.u32 %v1344
    %v1347 = vmul.u32 %v1340, %v1331
    %v1348 = vadd.s32 %v1343, %v1345
    %vm1349 = vc.u32 %v1343, %v1345
    %v1350 = vadd.s32 %v1346, 1
    %v1351 = vsel %vm1349, %v1350, %v1346
    %v1352 = vadd.s32 %v1347, %v1351
    %v1353 = vadd.s32 %v1352, 536870912
    %v1354 = vshrl.u32 %v1353, 30
    %v1355 = vshll.u32 %v1354, 30
    %v1356 = vsub.s32 %v1352, %v1355
    %vm1357 = vcmp.lt.s32.totalorder %v1356, 0
    %v1358 = vsub.s32 0, %v1356
    %v1359 = vsel %vm1357, %v1358, %v1356
    %v1360 = vclz %v1359
    %v1361 = vsub.s32 %v1360, 2
    %vm1362 = vcmp.gt.s32.totalorder 0, %v1361
    %v1363 = vsel %vm1362, 0, %v1361
    %v1364 = vsub.s32 32, %v1363
    %v1365 = vshll.u32 %v1356, %v1363
    %v1366 = vshrl.u32 %v1348, %v1364
    %v1367 = vor.u32 %v1365, %v1366
    %v1368 = vsub.s32 4294967266, %v1363
    %v1369 = vadd.s32 %v1368, 127
    %v1370 = vshll.u32 %v1369, 23
    %v1371 = vor.u32 4788187, %v1370
    %v1372 = vand.u32 2147483647, %v1371
    %v1374 = vcvt.s32.f32 %v1367
    %v1375 = vmul.f32 %v1374, %v1372
    %v1376 = vxor.u32 %v1375, 2147483648
    %v1377 = vsel %vm1294, %v1376, %v1375
    %v1378 = vsub.s32 4, %v1354
    %v1379 = vsel %vm1294, %v1378, %v1354
    %v1380 = vsel %vm1293, %v349, %v1377
    %v1381 = vsel %vm1293, 0, %v1379
    %v1382 = vcosq.f32.pop %v1380
    %v1383 = vsinq.f32.pop %v1380
    %vm1384 = vweird.f32 %v349
    %v1385 = vadd.s32 %v1381, 3
    %v1386 = vand.u32 %v1385, 3
    %vm1387 = vcmp.lt.s32.totalorder %v1386, 2
    %vm1388 = vcmp.eq.s32.totalorder %v1386, 0
    %v1389 = vxor.u32 %v1383, 2147483648
    %v1390 = vsel %vm1388, %v1382, %v1389
    %vm1391 = vcmp.eq.s32.totalorder %v1386, 2
    %v1392 = vxor.u32 %v1382, 2147483648
    %v1393 = vsel %vm1391, %v1392, %v1383
    %v1394 = vsel %vm1387, %v1390, %v1393
    %v1395 = vsel %vm1384, nan, %v1394
    %v1396 = vand.u32 2147483647, %v350
    %vm1397 = vcmp.le.f32.partialorder %v1396, 0.7853982
    %vm1398 = vcmp.lt.s32.totalorder %v350, 0
    %v1399 = vand.u32 %v350, 2139095040
    %v1400 = vshrl.u32 %v1399, 23
    %v1401 = vsub.s32 %v1400, 127
    %v1402 = vand.u32 2147483647, %v350
    %v1403 = vand.u32 %v1402, 8388607
    %v1404 = vor.u32 %v1403, 8388608
    %v1405 = vsub.s32 0, %v1404
    %v1406 = vadd.s32 %v1401, 1
    %vm1407 = vcmp.gt.s32.totalorder %v1406, 0
    %v1408 = vsel %vm1407, %v1406, 0
    %v1409 = vshrl.u32 %v1408, 5
    %v1410 = vand.u32 %v1408, 31
    %v1411 = vsub.s32 32, %v1410
    %v1412 = vshrl.u32 683565275, %v1411
    %v1413 = vshll.u32 683565275, %v1410
    %v1414 = vshrl.u32 2475754826, %v1411
    %v1415 = vor.u32 %v1413, %v1414
    %v1416 = vshll.u32 2475754826, %v1410
    %v1417 = vshrl.u32 2131351028, %v1411
    %v1418 = vor.u32 %v1416, %v1417
    %v1419 = vshll.u32 2131351028, %v1410
    %v1420 = vshrl.u32 2102212464, %v1411
    %v1421 = vor.u32 %v1419, %v1420
    %v1422 = vshll.u32 2102212464, %v1410
    %v1423 = vshrl.u32 920167782, %v1411
    %v1424 = vor.u32 %v1422, %v1423
    %v1425 = vshll.u32 920167782, %v1410
    %v1426 = vshrl.u32 1326507024, %v1411
    %v1427 = vor.u32 %v1425, %v1426
    %vm1428 = vcmp.lt.s32.totalorder %v1409, 1
    %vm1429 = vcmp.lt.s32.totalorder %v1409, 2
    %vm1430 = vcmp.lt.s32.totalorder %v1409, 3
    %vm1431 = vcmp.lt.s32.totalorder %v1409, 4
    %v1432 = vsel %vm1428, %v1412, %v1415
    %v1433 = vsel %vm1431, %v1421, 2102212464
    %v1434 = vsel %vm1430, %v1418, %v1433
    %v1435 = vsel %vm1429, %v1432, %v1434
    %v1436 = vsel %vm1428, %v1415, %v1418
    %v1437 = vsel %vm1431, %v1424, 920167782
    %v1438 = vsel %vm1430, %v1421, %v1437
    %v1439 = vsel %vm1429, %v1436, %v1438
    %v1440 = vsel %vm1428, %v1418, %v1421
    %v1441 = vsel %vm1431, %v1427, 1326507024
    %v1442 = vsel %vm1430, %v1424, %v1441
    %v1443 = vsel %vm1429, %v1440, %v1442
    %v1444 = vshll.u32 %v1404, 8
    %v1445 = vmul.u32.u64.compose %v1444, %v1443
    %v1446 = vextract.low.u32 %v1445
    %v1447 = vextract.high.u32 %v1445
    %v1448 = vmul.u32.u64.compose %v1444, %v1439
    %v1449 = vextract.low.u32 %v1448
    %v1450 = vextract.high.u32 %v1448
    %v1451 = vmul.u32 %v1444, %v1435
    %v1452 = vadd.s32 %v1447, %v1449
    %vm1453 = vc.u32 %v1447, %v1449
    %v1454 = vadd.s32 %v1450, 1
    %v1455 = vsel %vm1453, %v1454, %v1450
    %v1456 = vadd.s32 %v1451, %v1455
    %v1457 = vadd.s32 %v1456, 536870912
    %v1458 = vshrl.u32 %v1457, 30
    %v1459 = vshll.u32 %v1458, 30
    %v1460 = vsub.s32 %v1456, %v1459
    %vm1461 = vcmp.lt.s32.totalorder %v1460, 0
    %v1462 = vsub.s32 0, %v1460
    %v1463 = vsel %vm1461, %v1462, %v1460
    %v1464 = vclz %v1463
    %v1465 = vsub.s32 %v1464, 2
    %vm1466 = vcmp.gt.s32.totalorder 0, %v1465
    %v1467 = vsel %vm1466, 0, %v1465
    %v1468 = vsub.s32 32, %v1467
    %v1469 = vshll.u32 %v1460, %v1467
    %v1470 = vshrl.u32 %v1452, %v1468
    %v1471 = vor.u32 %v1469, %v1470
    %v1472 = vsub.s32 4294967266, %v1467
    %v1473 = vadd.s32 %v1472, 127
    %v1474 = vshll.u32 %v1473, 23
    %v1475 = vor.u32 4788187, %v1474
    %v1476 = vand.u32 2147483647, %v1475
    %v1478 = vcvt.s32.f32 %v1471
    %v1479 = vmul.f32 %v1478, %v1476
    %v1480 = vxor.u32 %v1479, 2147483648
    %v1481 = vsel %vm1398, %v1480, %v1479
    %v1482 = vsub.s32 4, %v1458
    %v1483 = vsel %vm1398, %v1482, %v1458
    %v1484 = vsel %vm1397, %v350, %v1481
    %v1485 = vsel %vm1397, 0, %v1483
    %v1486 = vcosq.f32.pop %v1484
    %v1487 = vsinq.f32.pop %v1484
    %vm1488 = vweird.f32 %v350
    %v1489 = vadd.s32 %v1485, 3
    %v1490 = vand.u32 %v1489, 3
    %vm1491 = vcmp.lt.s32.totalorder %v1490, 2
    %vm1492 = vcmp.eq.s32.totalorder %v1490, 0
    %v1493 = vxor.u32 %v1487, 2147483648
    %v1494 = vsel %vm1492, %v1486, %v1493
    %vm1495 = vcmp.eq.s32.totalorder %v1490, 2
    %v1496 = vxor.u32 %v1486, 2147483648
    %v1497 = vsel %vm1495, %v1496, %v1487
    %v1498 = vsel %vm1491, %v1494, %v1497
    %v1499 = vsel %vm1488, nan, %v1498
    %v1500 = vand.u32 2147483647, %v351
    %vm1501 = vcmp.le.f32.partialorder %v1500, 0.7853982
    %vm1502 = vcmp.lt.s32.totalorder %v351, 0
    %v1503 = vand.u32 %v351, 2139095040
    %v1504 = vshrl.u32 %v1503, 23
    %v1505 = vsub.s32 %v1504, 127
    %v1506 = vand.u32 2147483647, %v351
    %v1507 = vand.u32 %v1506, 8388607
    %v1508 = vor.u32 %v1507, 8388608
    %v1509 = vsub.s32 0, %v1508
    %v1510 = vadd.s32 %v1505, 1
    %vm1511 = vcmp.gt.s32.totalorder %v1510, 0
    %v1512 = vsel %vm1511, %v1510, 0
    %v1513 = vshrl.u32 %v1512, 5
    %v1514 = vand.u32 %v1512, 31
    %v1515 = vsub.s32 32, %v1514
    %v1516 = vshrl.u32 683565275, %v1515
    %v1517 = vshll.u32 683565275, %v1514
    %v1518 = vshrl.u32 2475754826, %v1515
    %v1519 = vor.u32 %v1517, %v1518
    %v1520 = vshll.u32 2475754826, %v1514
    %v1521 = vshrl.u32 2131351028, %v1515
    %v1522 = vor.u32 %v1520, %v1521
    %v1523 = vshll.u32 2131351028, %v1514
    %v1524 = vshrl.u32 2102212464, %v1515
    %v1525 = vor.u32 %v1523, %v1524
    %v1526 = vshll.u32 2102212464, %v1514
    %v1527 = vshrl.u32 920167782, %v1515
    %v1528 = vor.u32 %v1526, %v1527
    %v1529 = vshll.u32 920167782, %v1514
    %v1530 = vshrl.u32 1326507024, %v1515
    %v1531 = vor.u32 %v1529, %v1530
    %vm1532 = vcmp.lt.s32.totalorder %v1513, 1
    %vm1533 = vcmp.lt.s32.totalorder %v1513, 2
    %vm1534 = vcmp.lt.s32.totalorder %v1513, 3
    %vm1535 = vcmp.lt.s32.totalorder %v1513, 4
    %v1536 = vsel %vm1532, %v1516, %v1519
    %v1537 = vsel %vm1535, %v1525, 2102212464
    %v1538 = vsel %vm1534, %v1522, %v1537
    %v1539 = vsel %vm1533, %v1536, %v1538
    %v1540 = vsel %vm1532, %v1519, %v1522
    %v1541 = vsel %vm1535, %v1528, 920167782
    %v1542 = vsel %vm1534, %v1525, %v1541
    %v1543 = vsel %vm1533, %v1540, %v1542
    %v1544 = vsel %vm1532, %v1522, %v1525
    %v1545 = vsel %vm1535, %v1531, 1326507024
    %v1546 = vsel %vm1534, %v1528, %v1545
    %v1547 = vsel %vm1533, %v1544, %v1546
    %v1548 = vshll.u32 %v1508, 8
    %v1549 = vmul.u32.u64.compose %v1548, %v1547
    %v1550 = vextract.low.u32 %v1549
    %v1551 = vextract.high.u32 %v1549
    %v1552 = vmul.u32.u64.compose %v1548, %v1543
    %v1553 = vextract.low.u32 %v1552
    %v1554 = vextract.high.u32 %v1552
    %v1555 = vmul.u32 %v1548, %v1539
    %v1556 = vadd.s32 %v1551, %v1553
    %vm1557 = vc.u32 %v1551, %v1553
    %v1558 = vadd.s32 %v1554, 1
    %v1559 = vsel %vm1557, %v1558, %v1554
    %v1560 = vadd.s32 %v1555, %v1559
    %v1561 = vadd.s32 %v1560, 536870912
    %v1562 = vshrl.u32 %v1561, 30
    %v1563 = vshll.u32 %v1562, 30
    %v1564 = vsub.s32 %v1560, %v1563
    %vm1565 = vcmp.lt.s32.totalorder %v1564, 0
    %v1566 = vsub.s32 0, %v1564
    %v1567 = vsel %vm1565, %v1566, %v1564
    %v1568 = vclz %v1567
    %v1569 = vsub.s32 %v1568, 2
    %vm1570 = vcmp.gt.s32.totalorder 0, %v1569
    %v1571 = vsel %vm1570, 0, %v1569
    %v1572 = vsub.s32 32, %v1571
    %v1573 = vshll.u32 %v1564, %v1571
    %v1574 = vshrl.u32 %v1556, %v1572
    %v1575 = vor.u32 %v1573, %v1574
    %v1576 = vsub.s32 4294967266, %v1571
    %v1577 = vadd.s32 %v1576, 127
    %v1578 = vshll.u32 %v1577, 23
    %v1579 = vor.u32 4788187, %v1578
    %v1580 = vand.u32 2147483647, %v1579
    %v1582 = vcvt.s32.f32 %v1575
    %v1583 = vmul.f32 %v1582, %v1580
    %v1584 = vxor.u32 %v1583, 2147483648
    %v1585 = vsel %vm1502, %v1584, %v1583
    %v1586 = vsub.s32 4, %v1562
    %v1587 = vsel %vm1502, %v1586, %v1562
    %v1588 = vsel %vm1501, %v351, %v1585
    %v1589 = vsel %vm1501, 0, %v1587
    %v1590 = vcosq.f32.pop %v1588
    %v1591 = vsinq.f32.pop %v1588
    %vm1592 = vweird.f32 %v351
    %v1593 = vadd.s32 %v1589, 3
    %v1594 = vand.u32 %v1593, 3
    %vm1595 = vcmp.lt.s32.totalorder %v1594, 2
    %vm1596 = vcmp.eq.s32.totalorder %v1594, 0
    %v1597 = vxor.u32 %v1591, 2147483648
    %v1598 = vsel %vm1596, %v1590, %v1597
    %vm1599 = vcmp.eq.s32.totalorder %v1594, 2
    %v1600 = vxor.u32 %v1590, 2147483648
    %v1601 = vsel %vm1599, %v1600, %v1591
    %v1602 = vsel %vm1595, %v1598, %v1601
    %v1603 = vsel %vm1592, nan, %v1602
    %v1604 = vand.u32 2147483647, %v352
    %vm1605 = vcmp.le.f32.partialorder %v1604, 0.7853982
    %vm1606 = vcmp.lt.s32.totalorder %v352, 0
    %v1607 = vand.u32 %v352, 2139095040
    %v1608 = vshrl.u32 %v1607, 23
    %v1609 = vsub.s32 %v1608, 127
    %v1610 = vand.u32 2147483647, %v352
    %v1611 = vand.u32 %v1610, 8388607
    %v1612 = vor.u32 %v1611, 8388608
    %v1613 = vsub.s32 0, %v1612
    %v1614 = vadd.s32 %v1609, 1
    %vm1615 = vcmp.gt.s32.totalorder %v1614, 0
    %v1616 = vsel %vm1615, %v1614, 0
    %v1617 = vshrl.u32 %v1616, 5
    %v1618 = vand.u32 %v1616, 31
    %v1619 = vsub.s32 32, %v1618
    %v1620 = vshrl.u32 683565275, %v1619
    %v1621 = vshll.u32 683565275, %v1618
    %v1622 = vshrl.u32 2475754826, %v1619
    %v1623 = vor.u32 %v1621, %v1622
    %v1624 = vshll.u32 2475754826, %v1618
    %v1625 = vshrl.u32 2131351028, %v1619
    %v1626 = vor.u32 %v1624, %v1625
    %v1627 = vshll.u32 2131351028, %v1618
    %v1628 = vshrl.u32 2102212464, %v1619
    %v1629 = vor.u32 %v1627, %v1628
    %v1630 = vshll.u32 2102212464, %v1618
    %v1631 = vshrl.u32 920167782, %v1619
    %v1632 = vor.u32 %v1630, %v1631
    %v1633 = vshll.u32 920167782, %v1618
    %v1634 = vshrl.u32 1326507024, %v1619
    %v1635 = vor.u32 %v1633, %v1634
    %vm1636 = vcmp.lt.s32.totalorder %v1617, 1
    %vm1637 = vcmp.lt.s32.totalorder %v1617, 2
    %vm1638 = vcmp.lt.s32.totalorder %v1617, 3
    %vm1639 = vcmp.lt.s32.totalorder %v1617, 4
    %v1640 = vsel %vm1636, %v1620, %v1623
    %v1641 = vsel %vm1639, %v1629, 2102212464
    %v1642 = vsel %vm1638, %v1626, %v1641
    %v1643 = vsel %vm1637, %v1640, %v1642
    %v1644 = vsel %vm1636, %v1623, %v1626
    %v1645 = vsel %vm1639, %v1632, 920167782
    %v1646 = vsel %vm1638, %v1629, %v1645
    %v1647 = vsel %vm1637, %v1644, %v1646
    %v1648 = vsel %vm1636, %v1626, %v1629
    %v1649 = vsel %vm1639, %v1635, 1326507024
    %v1650 = vsel %vm1638, %v1632, %v1649
    %v1651 = vsel %vm1637, %v1648, %v1650
    %v1652 = vshll.u32 %v1612, 8
    %v1653 = vmul.u32.u64.compose %v1652, %v1651
    %v1654 = vextract.low.u32 %v1653
    %v1655 = vextract.high.u32 %v1653
    %v1656 = vmul.u32.u64.compose %v1652, %v1647
    %v1657 = vextract.low.u32 %v1656
    %v1658 = vextract.high.u32 %v1656
    %v1659 = vmul.u32 %v1652, %v1643
    %v1660 = vadd.s32 %v1655, %v1657
    %vm1661 = vc.u32 %v1655, %v1657
    %v1662 = vadd.s32 %v1658, 1
    %v1663 = vsel %vm1661, %v1662, %v1658
    %v1664 = vadd.s32 %v1659, %v1663
    %v1665 = vadd.s32 %v1664, 536870912
    %v1666 = vshrl.u32 %v1665, 30
    %v1667 = vshll.u32 %v1666, 30
    %v1668 = vsub.s32 %v1664, %v1667
    %vm1669 = vcmp.lt.s32.totalorder %v1668, 0
    %v1670 = vsub.s32 0, %v1668
    %v1671 = vsel %vm1669, %v1670, %v1668
    %v1672 = vclz %v1671
    %v1673 = vsub.s32 %v1672, 2
    %vm1674 = vcmp.gt.s32.totalorder 0, %v1673
    %v1675 = vsel %vm1674, 0, %v1673
    %v1676 = vsub.s32 32, %v1675
    %v1677 = vshll.u32 %v1668, %v1675
    %v1678 = vshrl.u32 %v1660, %v1676
    %v1679 = vor.u32 %v1677, %v1678
    %v1680 = vsub.s32 4294967266, %v1675
    %v1681 = vadd.s32 %v1680, 127
    %v1682 = vshll.u32 %v1681, 23
    %v1683 = vor.u32 4788187, %v1682
    %v1684 = vand.u32 2147483647, %v1683
    %v1686 = vcvt.s32.f32 %v1679
    %v1687 = vmul.f32 %v1686, %v1684
    %v1688 = vxor.u32 %v1687, 2147483648
    %v1689 = vsel %vm1606, %v1688, %v1687
    %v1690 = vsub.s32 4, %v1666
    %v1691 = vsel %vm1606, %v1690, %v1666
    %v1692 = vsel %vm1605, %v352, %v1689
    %v1693 = vsel %vm1605, 0, %v1691
    %v1694 = vcosq.f32.pop %v1692
    %v1695 = vsinq.f32.pop %v1692
    %vm1696 = vweird.f32 %v352
    %v1697 = vadd.s32 %v1693, 3
    %v1698 = vand.u32 %v1697, 3
    %vm1699 = vcmp.lt.s32.totalorder %v1698, 2
    %vm1700 = vcmp.eq.s32.totalorder %v1698, 0
    %v1701 = vxor.u32 %v1695, 2147483648
    %v1702 = vsel %vm1700, %v1694, %v1701
    %vm1703 = vcmp.eq.s32.totalorder %v1698, 2
    %v1704 = vxor.u32 %v1694, 2147483648
    %v1705 = vsel %vm1703, %v1704, %v1695
    %v1706 = vsel %vm1699, %v1702, %v1705
    %v1707 = vsel %vm1696, nan, %v1706
    %v1708 = vand.u32 2147483647, %v353
    %vm1709 = vcmp.le.f32.partialorder %v1708, 0.7853982
    %vm1710 = vcmp.lt.s32.totalorder %v353, 0
    %v1711 = vand.u32 %v353, 2139095040
    %v1712 = vshrl.u32 %v1711, 23
    %v1713 = vsub.s32 %v1712, 127
    %v1714 = vand.u32 2147483647, %v353
    %v1715 = vand.u32 %v1714, 8388607
    %v1716 = vor.u32 %v1715, 8388608
    %v1717 = vsub.s32 0, %v1716
    %v1718 = vadd.s32 %v1713, 1
    %vm1719 = vcmp.gt.s32.totalorder %v1718, 0
    %v1720 = vsel %vm1719, %v1718, 0
    %v1721 = vshrl.u32 %v1720, 5
    %v1722 = vand.u32 %v1720, 31
    %v1723 = vsub.s32 32, %v1722
    %v1724 = vshrl.u32 683565275, %v1723
    %v1725 = vshll.u32 683565275, %v1722
    %v1726 = vshrl.u32 2475754826, %v1723
    %v1727 = vor.u32 %v1725, %v1726
    %v1728 = vshll.u32 2475754826, %v1722
    %v1729 = vshrl.u32 2131351028, %v1723
    %v1730 = vor.u32 %v1728, %v1729
    %v1731 = vshll.u32 2131351028, %v1722
    %v1732 = vshrl.u32 2102212464, %v1723
    %v1733 = vor.u32 %v1731, %v1732
    %v1734 = vshll.u32 2102212464, %v1722
    %v1735 = vshrl.u32 920167782, %v1723
    %v1736 = vor.u32 %v1734, %v1735
    %v1737 = vshll.u32 920167782, %v1722
    %v1738 = vshrl.u32 1326507024, %v1723
    %v1739 = vor.u32 %v1737, %v1738
    %vm1740 = vcmp.lt.s32.totalorder %v1721, 1
    %vm1741 = vcmp.lt.s32.totalorder %v1721, 2
    %vm1742 = vcmp.lt.s32.totalorder %v1721, 3
    %vm1743 = vcmp.lt.s32.totalorder %v1721, 4
    %v1744 = vsel %vm1740, %v1724, %v1727
    %v1745 = vsel %vm1743, %v1733, 2102212464
    %v1746 = vsel %vm1742, %v1730, %v1745
    %v1747 = vsel %vm1741, %v1744, %v1746
    %v1748 = vsel %vm1740, %v1727, %v1730
    %v1749 = vsel %vm1743, %v1736, 920167782
    %v1750 = vsel %vm1742, %v1733, %v1749
    %v1751 = vsel %vm1741, %v1748, %v1750
    %v1752 = vsel %vm1740, %v1730, %v1733
    %v1753 = vsel %vm1743, %v1739, 1326507024
    %v1754 = vsel %vm1742, %v1736, %v1753
    %v1755 = vsel %vm1741, %v1752, %v1754
    %v1756 = vshll.u32 %v1716, 8
    %v1757 = vmul.u32.u64.compose %v1756, %v1755
    %v1758 = vextract.low.u32 %v1757
    %v1759 = vextract.high.u32 %v1757
    %v1760 = vmul.u32.u64.compose %v1756, %v1751
    %v1761 = vextract.low.u32 %v1760
    %v1762 = vextract.high.u32 %v1760
    %v1763 = vmul.u32 %v1756, %v1747
    %v1764 = vadd.s32 %v1759, %v1761
    %vm1765 = vc.u32 %v1759, %v1761
    %v1766 = vadd.s32 %v1762, 1
    %v1767 = vsel %vm1765, %v1766, %v1762
    %v1768 = vadd.s32 %v1763, %v1767
    %v1769 = vadd.s32 %v1768, 536870912
    %v1770 = vshrl.u32 %v1769, 30
    %v1771 = vshll.u32 %v1770, 30
    %v1772 = vsub.s32 %v1768, %v1771
    %vm1773 = vcmp.lt.s32.totalorder %v1772, 0
    %v1774 = vsub.s32 0, %v1772
    %v1775 = vsel %vm1773, %v1774, %v1772
    %v1776 = vclz %v1775
    %v1777 = vsub.s32 %v1776, 2
    %vm1778 = vcmp.gt.s32.totalorder 0, %v1777
    %v1779 = vsel %vm1778, 0, %v1777
    %v1780 = vsub.s32 32, %v1779
    %v1781 = vshll.u32 %v1772, %v1779
    %v1782 = vshrl.u32 %v1764, %v1780
    %v1783 = vor.u32 %v1781, %v1782
    %v1784 = vsub.s32 4294967266, %v1779
    %v1785 = vadd.s32 %v1784, 127
    %v1786 = vshll.u32 %v1785, 23
    %v1787 = vor.u32 4788187, %v1786
    %v1788 = vand.u32 2147483647, %v1787
    %v1790 = vcvt.s32.f32 %v1783
    %v1791 = vmul.f32 %v1790, %v1788
    %v1792 = vxor.u32 %v1791, 2147483648
    %v1793 = vsel %vm1710, %v1792, %v1791
    %v1794 = vsub.s32 4, %v1770
    %v1795 = vsel %vm1710, %v1794, %v1770
    %v1796 = vsel %vm1709, %v353, %v1793
    %v1797 = vsel %vm1709, 0, %v1795
    %v1798 = vcosq.f32.pop %v1796
    %v1799 = vsinq.f32.pop %v1796
    %vm1800 = vweird.f32 %v353
    %v1801 = vadd.s32 %v1797, 3
    %v1802 = vand.u32 %v1801, 3
    %vm1803 = vcmp.lt.s32.totalorder %v1802, 2
    %vm1804 = vcmp.eq.s32.totalorder %v1802, 0
    %v1805 = vxor.u32 %v1799, 2147483648
    %v1806 = vsel %vm1804, %v1798, %v1805
    %vm1807 = vcmp.eq.s32.totalorder %v1802, 2
    %v1808 = vxor.u32 %v1798, 2147483648
    %v1809 = vsel %vm1807, %v1808, %v1799
    %v1810 = vsel %vm1803, %v1806, %v1809
    %v1811 = vsel %vm1800, nan, %v1810
    %v1812 = vand.u32 2147483647, %v354
    %vm1813 = vcmp.le.f32.partialorder %v1812, 0.7853982
    %vm1814 = vcmp.lt.s32.totalorder %v354, 0
    %v1815 = vand.u32 %v354, 2139095040
    %v1816 = vshrl.u32 %v1815, 23
    %v1817 = vsub.s32 %v1816, 127
    %v1818 = vand.u32 2147483647, %v354
    %v1819 = vand.u32 %v1818, 8388607
    %v1820 = vor.u32 %v1819, 8388608
    %v1821 = vsub.s32 0, %v1820
    %v1822 = vadd.s32 %v1817, 1
    %vm1823 = vcmp.gt.s32.totalorder %v1822, 0
    %v1824 = vsel %vm1823, %v1822, 0
    %v1825 = vshrl.u32 %v1824, 5
    %v1826 = vand.u32 %v1824, 31
    %v1827 = vsub.s32 32, %v1826
    %v1828 = vshrl.u32 683565275, %v1827
    %v1829 = vshll.u32 683565275, %v1826
    %v1830 = vshrl.u32 2475754826, %v1827
    %v1831 = vor.u32 %v1829, %v1830
    %v1832 = vshll.u32 2475754826, %v1826
    %v1833 = vshrl.u32 2131351028, %v1827
    %v1834 = vor.u32 %v1832, %v1833
    %v1835 = vshll.u32 2131351028, %v1826
    %v1836 = vshrl.u32 2102212464, %v1827
    %v1837 = vor.u32 %v1835, %v1836
    %v1838 = vshll.u32 2102212464, %v1826
    %v1839 = vshrl.u32 920167782, %v1827
    %v1840 = vor.u32 %v1838, %v1839
    %v1841 = vshll.u32 920167782, %v1826
    %v1842 = vshrl.u32 1326507024, %v1827
    %v1843 = vor.u32 %v1841, %v1842
    %vm1844 = vcmp.lt.s32.totalorder %v1825, 1
    %vm1845 = vcmp.lt.s32.totalorder %v1825, 2
    %vm1846 = vcmp.lt.s32.totalorder %v1825, 3
    %vm1847 = vcmp.lt.s32.totalorder %v1825, 4
    %v1848 = vsel %vm1844, %v1828, %v1831
    %v1849 = vsel %vm1847, %v1837, 2102212464
    %v1850 = vsel %vm1846, %v1834, %v1849
    %v1851 = vsel %vm1845, %v1848, %v1850
    %v1852 = vsel %vm1844, %v1831, %v1834
    %v1853 = vsel %vm1847, %v1840, 920167782
    %v1854 = vsel %vm1846, %v1837, %v1853
    %v1855 = vsel %vm1845, %v1852, %v1854
    %v1856 = vsel %vm1844, %v1834, %v1837
    %v1857 = vsel %vm1847, %v1843, 1326507024
    %v1858 = vsel %vm1846, %v1840, %v1857
    %v1859 = vsel %vm1845, %v1856, %v1858
    %v1860 = vshll.u32 %v1820, 8
    %v1861 = vmul.u32.u64.compose %v1860, %v1859
    %v1862 = vextract.low.u32 %v1861
    %v1863 = vextract.high.u32 %v1861
    %v1864 = vmul.u32.u64.compose %v1860, %v1855
    %v1865 = vextract.low.u32 %v1864
    %v1866 = vextract.high.u32 %v1864
    %v1867 = vmul.u32 %v1860, %v1851
    %v1868 = vadd.s32 %v1863, %v1865
    %vm1869 = vc.u32 %v1863, %v1865
    %v1870 = vadd.s32 %v1866, 1
    %v1871 = vsel %vm1869, %v1870, %v1866
    %v1872 = vadd.s32 %v1867, %v1871
    %v1873 = vadd.s32 %v1872, 536870912
    %v1874 = vshrl.u32 %v1873, 30
    %v1875 = vshll.u32 %v1874, 30
    %v1876 = vsub.s32 %v1872, %v1875
    %vm1877 = vcmp.lt.s32.totalorder %v1876, 0
    %v1878 = vsub.s32 0, %v1876
    %v1879 = vsel %vm1877, %v1878, %v1876
    %v1880 = vclz %v1879
    %v1881 = vsub.s32 %v1880, 2
    %vm1882 = vcmp.gt.s32.totalorder 0, %v1881
    %v1883 = vsel %vm1882, 0, %v1881
    %v1884 = vsub.s32 32, %v1883
    %v1885 = vshll.u32 %v1876, %v1883
    %v1886 = vshrl.u32 %v1868, %v1884
    %v1887 = vor.u32 %v1885, %v1886
    %v1888 = vsub.s32 4294967266, %v1883
    %v1889 = vadd.s32 %v1888, 127
    %v1890 = vshll.u32 %v1889, 23
    %v1891 = vor.u32 4788187, %v1890
    %v1892 = vand.u32 2147483647, %v1891
    %v1894 = vcvt.s32.f32 %v1887
    %v1895 = vmul.f32 %v1894, %v1892
    %v1896 = vxor.u32 %v1895, 2147483648
    %v1897 = vsel %vm1814, %v1896, %v1895
    %v1898 = vsub.s32 4, %v1874
    %v1899 = vsel %vm1814, %v1898, %v1874
    %v1900 = vsel %vm1813, %v354, %v1897
    %v1901 = vsel %vm1813, 0, %v1899
    %v1902 = vcosq.f32.pop %v1900
    %v1903 = vsinq.f32.pop %v1900
    %vm1904 = vweird.f32 %v354
    %v1905 = vadd.s32 %v1901, 3
    %v1906 = vand.u32 %v1905, 3
    %vm1907 = vcmp.lt.s32.totalorder %v1906, 2
    %vm1908 = vcmp.eq.s32.totalorder %v1906, 0
    %v1909 = vxor.u32 %v1903, 2147483648
    %v1910 = vsel %vm1908, %v1902, %v1909
    %vm1911 = vcmp.eq.s32.totalorder %v1906, 2
    %v1912 = vxor.u32 %v1902, 2147483648
    %v1913 = vsel %vm1911, %v1912, %v1903
    %v1914 = vsel %vm1907, %v1910, %v1913
    %v1915 = vsel %vm1904, nan, %v1914
    %v1916 = vand.u32 2147483647, %v355
    %vm1917 = vcmp.le.f32.partialorder %v1916, 0.7853982
    %vm1918 = vcmp.lt.s32.totalorder %v355, 0
    %v1919 = vand.u32 %v355, 2139095040
    %v1920 = vshrl.u32 %v1919, 23
    %v1921 = vsub.s32 %v1920, 127
    %v1922 = vand.u32 2147483647, %v355
    %v1923 = vand.u32 %v1922, 8388607
    %v1924 = vor.u32 %v1923, 8388608
    %v1925 = vsub.s32 0, %v1924
    %v1926 = vadd.s32 %v1921, 1
    %vm1927 = vcmp.gt.s32.totalorder %v1926, 0
    %v1928 = vsel %vm1927, %v1926, 0
    %v1929 = vshrl.u32 %v1928, 5
    %v1930 = vand.u32 %v1928, 31
    %v1931 = vsub.s32 32, %v1930
    %v1932 = vshrl.u32 683565275, %v1931
    %v1933 = vshll.u32 683565275, %v1930
    %v1934 = vshrl.u32 2475754826, %v1931
    %v1935 = vor.u32 %v1933, %v1934
    %v1936 = vshll.u32 2475754826, %v1930
    %v1937 = vshrl.u32 2131351028, %v1931
    %v1938 = vor.u32 %v1936, %v1937
    %v1939 = vshll.u32 2131351028, %v1930
    %v1940 = vshrl.u32 2102212464, %v1931
    %v1941 = vor.u32 %v1939, %v1940
    %v1942 = vshll.u32 2102212464, %v1930
    %v1943 = vshrl.u32 920167782, %v1931
    %v1944 = vor.u32 %v1942, %v1943
    %v1945 = vshll.u32 920167782, %v1930
    %v1946 = vshrl.u32 1326507024, %v1931
    %v1947 = vor.u32 %v1945, %v1946
    %vm1948 = vcmp.lt.s32.totalorder %v1929, 1
    %vm1949 = vcmp.lt.s32.totalorder %v1929, 2
    %vm1950 = vcmp.lt.s32.totalorder %v1929, 3
    %vm1951 = vcmp.lt.s32.totalorder %v1929, 4
    %v1952 = vsel %vm1948, %v1932, %v1935
    %v1953 = vsel %vm1951, %v1941, 2102212464
    %v1954 = vsel %vm1950, %v1938, %v1953
    %v1955 = vsel %vm1949, %v1952, %v1954
    %v1956 = vsel %vm1948, %v1935, %v1938
    %v1957 = vsel %vm1951, %v1944, 920167782
    %v1958 = vsel %vm1950, %v1941, %v1957
    %v1959 = vsel %vm1949, %v1956, %v1958
    %v1960 = vsel %vm1948, %v1938, %v1941
    %v1961 = vsel %vm1951, %v1947, 1326507024
    %v1962 = vsel %vm1950, %v1944, %v1961
    %v1963 = vsel %vm1949, %v1960, %v1962
    %v1964 = vshll.u32 %v1924, 8
    %v1965 = vmul.u32.u64.compose %v1964, %v1963
    %v1966 = vextract.low.u32 %v1965
    %v1967 = vextract.high.u32 %v1965
    %v1968 = vmul.u32.u64.compose %v1964, %v1959
    %v1969 = vextract.low.u32 %v1968
    %v1970 = vextract.high.u32 %v1968
    %v1971 = vmul.u32 %v1964, %v1955
    %v1972 = vadd.s32 %v1967, %v1969
    %vm1973 = vc.u32 %v1967, %v1969
    %v1974 = vadd.s32 %v1970, 1
    %v1975 = vsel %vm1973, %v1974, %v1970
    %v1976 = vadd.s32 %v1971, %v1975
    %v1977 = vadd.s32 %v1976, 536870912
    %v1978 = vshrl.u32 %v1977, 30
    %v1979 = vshll.u32 %v1978, 30
    %v1980 = vsub.s32 %v1976, %v1979
    %vm1981 = vcmp.lt.s32.totalorder %v1980, 0
    %v1982 = vsub.s32 0, %v1980
    %v1983 = vsel %vm1981, %v1982, %v1980
    %v1984 = vclz %v1983
    %v1985 = vsub.s32 %v1984, 2
    %vm1986 = vcmp.gt.s32.totalorder 0, %v1985
    %v1987 = vsel %vm1986, 0, %v1985
    %v1988 = vsub.s32 32, %v1987
    %v1989 = vshll.u32 %v1980, %v1987
    %v1990 = vshrl.u32 %v1972, %v1988
    %v1991 = vor.u32 %v1989, %v1990
    %v1992 = vsub.s32 4294967266, %v1987
    %v1993 = vadd.s32 %v1992, 127
    %v1994 = vshll.u32 %v1993, 23
    %v1995 = vor.u32 4788187, %v1994
    %v1996 = vand.u32 2147483647, %v1995
    %v1998 = vcvt.s32.f32 %v1991
    %v1999 = vmul.f32 %v1998, %v1996
    %v2000 = vxor.u32 %v1999, 2147483648
    %v2001 = vsel %vm1918, %v2000, %v1999
    %v2002 = vsub.s32 4, %v1978
    %v2003 = vsel %vm1918, %v2002, %v1978
    %v2004 = vsel %vm1917, %v355, %v2001
    %v2005 = vsel %vm1917, 0, %v2003
    %v2006 = vcosq.f32.pop %v2004
    %v2007 = vsinq.f32.pop %v2004
    %vm2008 = vweird.f32 %v355
    %v2009 = vadd.s32 %v2005, 3
    %v2010 = vand.u32 %v2009, 3
    %vm2011 = vcmp.lt.s32.totalorder %v2010, 2
    %vm2012 = vcmp.eq.s32.totalorder %v2010, 0
    %v2013 = vxor.u32 %v2007, 2147483648
    %v2014 = vsel %vm2012, %v2006, %v2013
    %vm2015 = vcmp.eq.s32.totalorder %v2010, 2
    %v2016 = vxor.u32 %v2006, 2147483648
    %v2017 = vsel %vm2015, %v2016, %v2007
    %v2018 = vsel %vm2011, %v2014, %v2017
    %v2019 = vsel %vm2008, nan, %v2018
    %2020 = vst.msk [vmem:[%s3] sm:$0xff] %vm281, %v459
    %2021 = vst.msk [vmem:[%s3 + $0x8] sm:$0xff] %vm281, %v563
    %2022 = vst.msk [vmem:[%s3 + $0x10] sm:$0xff] %vm281, %v667
    %2023 = vst.msk [vmem:[%s3 + $0x18] sm:$0xff] %vm281, %v771
    %2024 = vst.msk [vmem:[%s3 + $0x20] sm:$0xff] %vm281, %v875
    %2025 = vst.msk [vmem:[%s3 + $0x28] sm:$0xff] %vm281, %v979
    %2026 = vst.msk [vmem:[%s3 + $0x30] sm:$0xff] %vm281, %v1083
    %2027 = vst.msk [vmem:[%s3 + $0x38] sm:$0xff] %vm281, %v1187
    %2028 = vst.msk [vmem:[%s3 + $0x40] sm:$0xff] %vm281, %v1291
    %2029 = vst.msk [vmem:[%s3 + $0x48] sm:$0xff] %vm281, %v1395
    %2030 = vst.msk [vmem:[%s3 + $0x50] sm:$0xff] %vm281, %v1499
    %2031 = vst.msk [vmem:[%s3 + $0x58] sm:$0xff] %vm281, %v1603
    %2032 = vst.msk [vmem:[%s3 + $0x60] sm:$0xff] %vm281, %v1707
    %2033 = vst.msk [vmem:[%s3 + $0x68] sm:$0xff] %vm281, %v1811
    %2034 = vst.msk [vmem:[%s3 + $0x70] sm:$0xff] %vm281, %v1915
    %2035 = vst.msk [vmem:[%s3 + $0x78] sm:$0xff] %vm281, %v2019
  $region21: #{tpu_custom_call.1} parent=0 // pred_fallthru
    _
  // Predicated region
  $region22: #{tpu_custom_call.1} parent=0 // pred_check
    _
  $region23: #{tpu_custom_call.1} parent=0 // pred_check_branch
    %2037 = sbr.rel (0) target = $region25
  $region24: #{tpu_custom_call.1} parent=0 // pred_region
    _
  $region25: #{tpu_custom_call.1} parent=0 // pred_fallthru
    _
  // Predicated region
  $region26: #{tpu_custom_call.1} parent=0 // pred_check
    _
  $region27: #{tpu_custom_call.1} parent=0 // pred_check_branch
    %2039 = sbr.rel (0) target = $region29
  $region28: #{tpu_custom_call.1} parent=0 // pred_region
    _
  $region29: #{tpu_custom_call.1} parent=0 // pred_fallthru
    _

</llo_original>
